<compile_context>
chip_gen: v7x
topology: tpu7x:2x2x1
jax: 0.10.0
libtpu: 0.0.40
codegen_flags: <defaults>
</compile_context>

<pallas_src>
import functools

import jax
import jax.numpy as jnp
from jax.experimental import pallas as pl
from jax.experimental.pallas import tpu as pltpu

_LANES = 128


def _round_up(x, m):
    return ((x + m - 1) // m) * m


# ---------------------------------------------------------------------------
# Pallas kernel: LN1 -> Linear -> GELU -> Linear -> +residual -> LN2 on one
# (tile, D) row tile.  Dropout(0.1) layers are identity (eval mode).
# ---------------------------------------------------------------------------
def _fused_ln_mlp_ln_kernel(x_ref, g1_ref, be1_ref, w1_ref, b1_ref,
                            w2_ref, b2_ref, g2_ref, be2_ref, o_ref,
                            *, eps, approx_gelu):
    x = x_ref[...].astype(jnp.float32)                       # (T, D)

    # LayerNorm 1 — centered variance (robust when |mean| >> std).
    mean1 = jnp.mean(x, axis=-1, keepdims=True)
    xc = x - mean1
    var1 = jnp.mean(xc * xc, axis=-1, keepdims=True)
    y = xc * jax.lax.rsqrt(var1 + eps)
    y = y * g1_ref[...].astype(jnp.float32) + be1_ref[...].astype(jnp.float32)

    # Linear 1 — MXU operands in the weights' native dtype, f32 accumulation.
    h = jnp.dot(y.astype(w1_ref.dtype), w1_ref[...],
                preferred_element_type=jnp.float32)
    h = h + b1_ref[...].astype(jnp.float32)
    # tanh GELU runs on the EUP (otherwise-idle VLIW slot); exact erf is a VPU
    # polynomial.  torch nn.GELU() default is exact erf -> approx_gelu=False.
    h = jax.nn.gelu(h, approximate=approx_gelu)
    # Dropout(0.1): identity in eval mode.

    # Linear 2 (Dropout(0.1): identity in eval mode).
    m = jnp.dot(h.astype(w2_ref.dtype), w2_ref[...],
                preferred_element_type=jnp.float32)
    m = m + b2_ref[...].astype(jnp.float32)

    # Residual on the post-LN1 activations (as in the PyTorch block), then LN2.
    v = y + m
    mean2 = jnp.mean(v, axis=-1, keepdims=True)
    vc = v - mean2
    var2 = jnp.mean(vc * vc, axis=-1, keepdims=True)
    o = vc * jax.lax.rsqrt(var2 + eps)
    o = o * g2_ref[...].astype(jnp.float32) + be2_ref[...].astype(jnp.float32)
    o_ref[...] = o.astype(o_ref.dtype)


@functools.partial(jax.jit,
                   static_argnames=("tile_n", "eps", "approx_gelu",
                                    "single_buffer"))
def fused_ln_mlp_ln(x, ln1_g, ln1_b, w1, b1, w2, b2, ln2_g, ln2_b,
                    *, tile_n=256, eps=1e-5, approx_gelu=True,
                    single_buffer=True):
    """x: (N, D) tokens.  Returns LN2(LN1(x) + MLP(LN1(x))), same shape/dtype."""
    n, d = x.shape
    m_dim = w1.shape[1]
    mp = _round_up(m_dim, _LANES)

    # Row tile: aim for >= 8 grid steps so each v7x TensorCore (2 cores share
    # the "parallel" axis) still gets >= 4 pipelined steps; keep the tile a
    # multiple of the sublane packing.
    sub = 16 if x.dtype == jnp.bfloat16 else 8
    tile = _round_up(max(1, n // 8), sub)
    tile = max(sub, (min(tile, tile_n) // sub) * sub)
    n_pad = _round_up(n, tile)

    # Activations stay un-padded in D (block dim == full array dim is legal).
    # Only the hidden/MLP dim of the tiny weights is lane-padded; the padded
    # b1 entries are 0 (gelu(0)=0) and the padded W2 rows are 0, so the math
    # is exact.  Row padding (if any) is sliced off at the end.
    xp = x if n_pad == n else jnp.pad(x, ((0, n_pad - n), (0, 0)))
    g1, be1 = ln1_g.reshape(1, d), ln1_b.reshape(1, d)
    g2, be2 = ln2_g.reshape(1, d), ln2_b.reshape(1, d)
    b2p = b2.reshape(1, d)
    if mp == m_dim:
        w1p, b1p, w2p = w1, b1.reshape(1, m_dim), w2
    else:
        w1p = jnp.pad(w1, ((0, 0), (0, mp - m_dim)))
        b1p = jnp.pad(b1.reshape(1, m_dim), ((0, 0), (0, mp - m_dim)))
        w2p = jnp.pad(w2, ((0, mp - m_dim), (0, 0)))

    grid = (n_pad // tile,)

    if single_buffer:
        def _resident(shape):
            # Block index never changes across the grid -> a second buffer buys
            # no overlap; single-buffer to halve resident-weight VMEM.
            return pl.BlockSpec(shape, lambda i: (0, 0),
                                pipeline_mode=pl.Buffered(1))
    else:
        def _resident(shape):
            return pl.BlockSpec(shape, lambda i: (0, 0))

    x_item = jnp.dtype(x.dtype).itemsize
    w_item = jnp.dtype(w1.dtype).itemsize
    param_bytes = (2 * d * mp + mp + 6 * d) * w_item
    vmem_est = (4 * tile * d * x_item                         # in/out tiles (x2 buf)
                + (1 if single_buffer else 2) * param_bytes   # resident params
                + 8 * tile * max(d, mp) * 4)                  # f32 temporaries
    try:
        phys_vmem = pltpu.get_tpu_info().vmem_capacity_bytes  # 128 MiB v5e/v6e, 64 MiB v7x
    except Exception:
        phys_vmem = 64 * 2 ** 20                              # v7x-safe fallback
    vmem_limit = int(min(int(0.85 * phys_vmem),
                         max(32 * 2 ** 20, 2 * vmem_est)))

    cost = pl.CostEstimate(                                   # real (un-padded) dims
        flops=4 * n_pad * d * m_dim,
        transcendentals=n_pad * m_dim,
        bytes_accessed=2 * n_pad * d * x_item + param_bytes,
    )

    kernel = functools.partial(_fused_ln_mlp_ln_kernel,
                               eps=eps, approx_gelu=approx_gelu)

    out = pl.pallas_call(
        kernel,
        out_shape=jax.ShapeDtypeStruct((n_pad, d), x.dtype),
        grid_spec=pltpu.PrefetchScalarGridSpec(
            num_scalar_prefetch=0,
            grid=grid,
            in_specs=[
                pl.BlockSpec((tile, d), lambda i: (i, 0)),    # x row tile
                _resident((1, d)), _resident((1, d)),         # LN1 gamma/beta
                _resident((d, mp)), _resident((1, mp)),       # W1, b1
                _resident((mp, d)), _resident((1, d)),        # W2, b2
                _resident((1, d)), _resident((1, d)),         # LN2 gamma/beta
            ],
            out_specs=pl.BlockSpec((tile, d), lambda i: (i, 0)),
        ),
        compiler_params=pltpu.CompilerParams(
            dimension_semantics=("parallel",),
            vmem_limit_bytes=vmem_limit,
        ),
        cost_estimate=cost,
    )(xp, g1, be1, w1p, b1p, w2p, b2p, g2, be2)
    return out if n_pad == n else out[:n]


# ---------------------------------------------------------------------------
# Axial self-attention front end (plain JAX).
# TODO(synk): axial SelfAttention stays in plain JAX — axial sequence lengths
# (4..16) and head_dim (8) are far below the TPU (8,128)/MXU tiles, so a
# Pallas kernel would not pay off here.
# ---------------------------------------------------------------------------
def _self_attention(x, p, heads):
    """x: (B, T, D).  Mirrors SelfAttention.forward."""
    b, t, _ = x.shape
    q = x @ p["wq"]
    k, v = jnp.split(x @ p["wkv"], 2, axis=-1)
    e = q.shape[-1] // heads

    def merge_heads(z):
        return z.reshape(b, t, heads, e).transpose(0, 2, 1, 3).reshape(b * heads, t, e)

    q, k, v = merge_heads(q), merge_heads(k), merge_heads(v)
    dots = jnp.einsum("bie,bje->bij", q, k) * (e ** -0.5)
    attn = jax.nn.softmax(dots, axis=-1)
    o = jnp.einsum("bij,bje->bie", attn, v)
    o = o.reshape(b, heads, t, e).transpose(0, 2, 1, 3).reshape(b, t, heads * e)
    return o @ p["wo"] + p["bo"]


def _axial_attention_cl(x_cl, attn_params, heads):
    """x_cl: (b, z, h, w, C) channel-last.  Sum of the three axial attentions
    (params[0] -> z axis, [1] -> h, [2] -> w) == AxialAttention(dim_index=1,
    sum_axial_out=True) applied to the channel-first tensor."""
    b, z, h, w, c = x_cl.shape
    # w axis: channels already last, w second-to-last -> no transpose.
    out = _self_attention(x_cl.reshape(b * z * h, w, c),
                          attn_params[2], heads).reshape(b, z, h, w, c)
    # h axis.
    xh = jnp.transpose(x_cl, (0, 1, 3, 2, 4))
    oh = _self_attention(xh.reshape(b * z * w, h, c), attn_params[1], heads)
    out = out + jnp.transpose(oh.reshape(b, z, w, h, c), (0, 1, 3, 2, 4))
    # z axis.
    xz = jnp.transpose(x_cl, (0, 2, 3, 1, 4))
    oz = _self_attention(xz.reshape(b * h * w, z, c), attn_params[0], heads)
    out = out + jnp.transpose(oz.reshape(b, h, w, z, c), (0, 3, 1, 2, 4))
    return out


# ---------------------------------------------------------------------------
# Full model (channel-last internally: tokenisation is a pure reshape, so the
# per-block transpose pair of the PyTorch code collapses to one transpose at
# model entry and one at exit).
# ---------------------------------------------------------------------------
def _axial_block_cl(x_cl, p, heads, *, tile_n, approx_gelu, single_buffer):
    b, z, h, w, c = x_cl.shape
    # Axial attention + residual.  Dropout(0.1): identity in eval mode.
    u = x_cl + _axial_attention_cl(x_cl, p["attn"], heads)
    tok = u.reshape(b * z * h * w, c)                 # pure reshape, no transpose
    out = fused_ln_mlp_ln(tok, p["ln1_g"], p["ln1_b"], p["w1"], p["b1"],
                          p["w2"], p["b2"], p["ln2_g"], p["ln2_b"],
                          tile_n=tile_n, approx_gelu=approx_gelu,
                          single_buffer=single_buffer)
    return out.reshape(b, z, h, w, c)


@functools.partial(jax.jit,
                   static_argnames=("heads", "tile_n", "approx_gelu",
                                    "single_buffer"))
def axial_transformer(x, block_params, *, heads, tile_n=256,
                      approx_gelu=True, single_buffer=True):
    """x: (b, C, z, h, w), same layout/semantics as the PyTorch module."""
    x_cl = jnp.transpose(x, (0, 2, 3, 4, 1))          # channel-last, once
    for p in block_params:
        x_cl = _axial_block_cl(x_cl, p, heads, tile_n=tile_n,
                               approx_gelu=approx_gelu,
                               single_buffer=single_buffer)
    return jnp.transpose(x_cl, (0, 4, 1, 2, 3))       # back to channel-first


# ---------------------------------------------------------------------------
# Pure-JAX reference (mirrors the PyTorch forward, channel-first, eval mode).
# ---------------------------------------------------------------------------
def _calculate_permutations(num_dimensions, emb_dim):
    total = num_dimensions + 2
    emb_dim = emb_dim if emb_dim > 0 else emb_dim + total
    axial_dims = [i for i in range(1, total) if i != emb_dim]
    perms = []
    for a in axial_dims:
        rest = sorted(set(range(total)) - {a, emb_dim})
        perms.append([*rest, a, emb_dim])
    return perms


def _axial_attention_ref(x, attn_params, heads):
    perms = _calculate_permutations(3, 1)
    total = None
    for perm, p in zip(perms, attn_params):
        inv = [0] * len(perm)
        for i, axis in enumerate(perm):
            inv[axis] = i
        xa = jnp.transpose(x, perm)
        shp = xa.shape
        out = _self_attention(xa.reshape(-1, shp[-2], shp[-1]), p, heads)
        out = jnp.transpose(out.reshape(shp), inv)
        total = out if total is None else total + out
    return total


def _layernorm_ref(x, g, b, eps=1e-5):
    mean = jnp.mean(x, axis=-1, keepdims=True)
    var = jnp.mean((x - mean) ** 2, axis=-1, keepdims=True)
    return (x - mean) * jax.lax.rsqrt(var + eps) * g + b


@functools.partial(jax.jit, static_argnames=("heads", "approx_gelu"))
def axial_transformer_reference(x, block_params, *, heads, approx_gelu=True):
    for p in block_params:
        b, c, z, ph, pw = x.shape
        u = x + _axial_attention_ref(x, p["attn"], heads)
        tok = u.reshape(b, c, -1).transpose(0, 2, 1)
        y = _layernorm_ref(tok, p["ln1_g"], p["ln1_b"])
        mlp = (jax.nn.gelu(y @ p["w1"] + p["b1"], approximate=approx_gelu)
               @ p["w2"] + p["b2"])
        o = _layernorm_ref(y + mlp, p["ln2_g"], p["ln2_b"])
        x = o.transpose(0, 2, 1).reshape(b, c, z, ph, pw)
    return x


def init_params(key, embed_dim, heads, depth, dtype=jnp.float32):
    """Deterministic init mimicking nn.Linear's uniform(+-1/sqrt(fan_in))."""
    mlp_dim = embed_dim * 4
    hidden = (embed_dim // heads) * heads

    def linear(k, fan_in, shape):
        lim = 1.0 / (fan_in ** 0.5)
        return jax.random.uniform(k, shape, dtype, -lim, lim)

    blocks = []
    for _ in range(depth):
        key, *subkeys = jax.random.split(key, 21)
        ks = iter(subkeys)
        attn = []
        for _axis in range(3):
            attn.append({
                "wq": linear(next(ks), embed_dim, (embed_dim, hidden)),
                "wkv": linear(next(ks), embed_dim, (embed_dim, 2 * hidden)),
                "wo": linear(next(ks), hidden, (hidden, embed_dim)),
                "bo": linear(next(ks), hidden, (embed_dim,)),
            })
        blocks.append({
            "attn": attn,
            "ln1_g": 1.0 + 0.1 * jax.random.normal(next(ks), (embed_dim,), dtype),
            "ln1_b": 0.1 * jax.random.normal(next(ks), (embed_dim,), dtype),
            "w1": linear(next(ks), embed_dim, (embed_dim, mlp_dim)),
            "b1": linear(next(ks), embed_dim, (mlp_dim,)),
            "w2": linear(next(ks), mlp_dim, (mlp_dim, embed_dim)),
            "b2": linear(next(ks), mlp_dim, (embed_dim,)),
            "ln2_g": 1.0 + 0.1 * jax.random.normal(next(ks), (embed_dim,), dtype),
            "ln2_b": 0.1 * jax.random.normal(next(ks), (embed_dim,), dtype),
        })
    return blocks


if __name__ == "__main__":
    batch, embed_dim, heads, depth = 2, 32, 4, 2
    z, ph, pw = 4, 8, 8          # 512 tokens total -> 8 row tiles of 64

    key = jax.random.PRNGKey(0)
    kx, kp = jax.random.split(key)
    x = jax.random.normal(kx, (batch, embed_dim, z, ph, pw), jnp.float32)
    params = init_params(kp, embed_dim, heads, depth)

    run = functools.partial(axial_transformer, x, params, heads=heads, tile_n=256)
    try:
        out = jax.block_until_ready(run(single_buffer=True))
        single_buffer = True
    except Exception:
        # Fallback in case this Mosaic build rejects pl.Buffered(1) residents;
        # default double buffering is functionally identical.
        out = jax.block_until_ready(run(single_buffer=False))
        single_buffer = False

    assert out.shape == x.shape and out.dtype == x.dtype
    assert bool(jnp.all(jnp.isfinite(out)))

    # Reference mirrors the PyTorch forward; both sides use tanh GELU here
    # (torch nn.GELU() is exact erf -> set approx_gelu=False for a bit-closer
    # match; the perf review trades that ~1e-3 deviation for the EUP slot).
    ref = jax.block_until_ready(
        axial_transformer_reference(x, params, heads=heads, approx_gelu=True))
    max_err = float(jnp.max(jnp.abs(out - ref)))
    assert bool(jnp.allclose(out, ref, atol=5e-2, rtol=5e-2)), max_err

    # bf16 smoke test of the fused kernel: MXU operands stay bf16, f32 accum.
    tokens = jax.random.normal(jax.random.PRNGKey(1), (512, embed_dim), jnp.float32)
    p0 = params[0]
    args = (p0["ln1_g"], p0["ln1_b"], p0["w1"], p0["b1"],
            p0["w2"], p0["b2"], p0["ln2_g"], p0["ln2_b"])
    y32 = fused_ln_mlp_ln(tokens, *args, single_buffer=single_buffer)
    y16 = jax.block_until_ready(
        fused_ln_mlp_ln(tokens.astype(jnp.bfloat16),
                        *(a.astype(jnp.bfloat16) for a in args),
                        single_buffer=single_buffer))
    assert y16.dtype == jnp.bfloat16
    assert float(jnp.max(jnp.abs(y16.astype(jnp.float32) - y32))) < 0.25

    print("KERNEL_OK")
</pallas_src>

<mosaic_0001>
module attributes {stable_mosaic.version = 11 : i64} {
  func.func @_fused_ln_mlp_ln_kernel(%arg0: i32, %arg1: memref<64x32xf32, #tpu.memory_space<vmem>>, %arg2: memref<1x32xf32, #tpu.memory_space<vmem>>, %arg3: memref<1x32xf32, #tpu.memory_space<vmem>>, %arg4: memref<32x128xf32, #tpu.memory_space<vmem>>, %arg5: memref<1x128xf32, #tpu.memory_space<vmem>>, %arg6: memref<128x32xf32, #tpu.memory_space<vmem>>, %arg7: memref<1x32xf32, #tpu.memory_space<vmem>>, %arg8: memref<1x32xf32, #tpu.memory_space<vmem>>, %arg9: memref<1x32xf32, #tpu.memory_space<vmem>>, %arg10: memref<64x32xf32, #tpu.memory_space<vmem>>) attributes {dimension_semantics = [#tpu.dimension_semantics<parallel>], iteration_bounds = array<i64: 8>, scalar_prefetch = 0 : i64, scratch_operands = 0 : i64, tpu.core_type = #tpu.core_type<tc>, window_params = [{transform_indices = @transform_0, window_bounds = array<i64: 64, 32>}, {pipeline_mode = #tpu.pipeline_mode<synchronous>, transform_indices = @transform_1, window_bounds = array<i64: 1, 32>}, {pipeline_mode = #tpu.pipeline_mode<synchronous>, transform_indices = @transform_2, window_bounds = array<i64: 1, 32>}, {pipeline_mode = #tpu.pipeline_mode<synchronous>, transform_indices = @transform_3, window_bounds = array<i64: 32, 128>}, {pipeline_mode = #tpu.pipeline_mode<synchronous>, transform_indices = @transform_4, window_bounds = array<i64: 1, 128>}, {pipeline_mode = #tpu.pipeline_mode<synchronous>, transform_indices = @transform_5, window_bounds = array<i64: 128, 32>}, {pipeline_mode = #tpu.pipeline_mode<synchronous>, transform_indices = @transform_6, window_bounds = array<i64: 1, 32>}, {pipeline_mode = #tpu.pipeline_mode<synchronous>, transform_indices = @transform_7, window_bounds = array<i64: 1, 32>}, {pipeline_mode = #tpu.pipeline_mode<synchronous>, transform_indices = @transform_8, window_bounds = array<i64: 1, 32>}, {transform_indices = @transform_9, window_bounds = array<i64: 64, 32>}]} {
    %c0 = arith.constant 0 : index
    %c0_0 = arith.constant 0 : index
    %0 = vector.load %arg1[%c0, %c0_0] : memref<64x32xf32, #tpu.memory_space<vmem>>, vector<64x32xf32>
    %cst = arith.constant dense<0.000000e+00> : vector<64xf32>
    %1 = vector.multi_reduction <add>, %0, %cst [1] : vector<64x32xf32> to vector<64xf32>
    %2 = vector.shape_cast %1 : vector<64xf32> to vector<64x1xf32>
    %cst_1 = arith.constant 3.200000e+01 : f32
    %3 = vector.broadcast %cst_1 : f32 to vector<64x1xf32>
    %4 = arith.divf %2, %3 : vector<64x1xf32>
    %5 = vector.broadcast %4 : vector<64x1xf32> to vector<64x32xf32>
    %6 = arith.subf %0, %5 : vector<64x32xf32>
    %7 = arith.mulf %6, %6 : vector<64x32xf32>
    %cst_2 = arith.constant dense<0.000000e+00> : vector<64xf32>
    %8 = vector.multi_reduction <add>, %7, %cst_2 [1] : vector<64x32xf32> to vector<64xf32>
    %9 = vector.shape_cast %8 : vector<64xf32> to vector<64x1xf32>
    %cst_3 = arith.constant 3.200000e+01 : f32
    %10 = vector.broadcast %cst_3 : f32 to vector<64x1xf32>
    %11 = arith.divf %9, %10 : vector<64x1xf32>
    %cst_4 = arith.constant 9.99999974E-6 : f32
    %12 = vector.broadcast %cst_4 : f32 to vector<64x1xf32>
    %13 = arith.addf %11, %12 : vector<64x1xf32>
    %14 = math.rsqrt %13 : vector<64x1xf32>
    %15 = vector.broadcast %14 : vector<64x1xf32> to vector<64x32xf32>
    %16 = arith.mulf %6, %15 : vector<64x32xf32>
    %c0_5 = arith.constant 0 : index
    %c0_6 = arith.constant 0 : index
    %17 = vector.load %arg2[%c0_5, %c0_6] : memref<1x32xf32, #tpu.memory_space<vmem>>, vector<1x32xf32>
    %18 = vector.broadcast %17 : vector<1x32xf32> to vector<64x32xf32>
    %19 = arith.mulf %16, %18 : vector<64x32xf32>
    %c0_7 = arith.constant 0 : index
    %c0_8 = arith.constant 0 : index
    %20 = vector.load %arg3[%c0_7, %c0_8] : memref<1x32xf32, #tpu.memory_space<vmem>>, vector<1x32xf32>
    %21 = vector.broadcast %20 : vector<1x32xf32> to vector<64x32xf32>
    %22 = arith.addf %19, %21 : vector<64x32xf32>
    %c0_9 = arith.constant 0 : index
    %c0_10 = arith.constant 0 : index
    %23 = vector.load %arg4[%c0_9, %c0_10] : memref<32x128xf32, #tpu.memory_space<vmem>>, vector<32x128xf32>
    %cst_11 = arith.constant dense<0.000000e+00> : vector<64x128xf32>
    %24 = tpu.matmul %22, %23, %cst_11 {dimension_numbers = #tpu.dot_dimension_numbers<[1], [0], [0], [1], [0, 0, 1, 1], [], []>} : vector<64x32xf32>, vector<32x128xf32>, vector<64x128xf32> -> vector<64x128xf32>
    %c0_12 = arith.constant 0 : index
    %c0_13 = arith.constant 0 : index
    %25 = vector.load %arg5[%c0_12, %c0_13] : memref<1x128xf32, #tpu.memory_space<vmem>>, vector<1x128xf32>
    %26 = vector.broadcast %25 : vector<1x128xf32> to vector<64x128xf32>
    %27 = arith.addf %24, %26 : vector<64x128xf32>
    %28 = arith.mulf %27, %27 : vector<64x128xf32>
    %29 = arith.mulf %27, %28 : vector<64x128xf32>
    %cst_14 = arith.constant 4.471500e-02 : f32
    %30 = vector.broadcast %cst_14 : f32 to vector<64x128xf32>
    %31 = arith.mulf %30, %29 : vector<64x128xf32>
    %32 = arith.addf %27, %31 : vector<64x128xf32>
    %cst_15 = arith.constant 0.797884583 : f32
    %33 = vector.broadcast %cst_15 : f32 to vector<64x128xf32>
    %34 = arith.mulf %33, %32 : vector<64x128xf32>
    %35 = math.tanh %34 : vector<64x128xf32>
    %cst_16 = arith.constant 1.000000e+00 : f32
    %36 = vector.broadcast %cst_16 : f32 to vector<64x128xf32>
    %37 = arith.addf %36, %35 : vector<64x128xf32>
    %cst_17 = arith.constant 5.000000e-01 : f32
    %38 = vector.broadcast %cst_17 : f32 to vector<64x128xf32>
    %39 = arith.mulf %38, %37 : vector<64x128xf32>
    %40 = arith.mulf %27, %39 : vector<64x128xf32>
    %c0_18 = arith.constant 0 : index
    %c0_19 = arith.constant 0 : index
    %41 = vector.load %arg6[%c0_18, %c0_19] : memref<128x32xf32, #tpu.memory_space<vmem>>, vector<128x32xf32>
    %cst_20 = arith.constant dense<0.000000e+00> : vector<64x32xf32>
    %42 = tpu.matmul %40, %41, %cst_20 {dimension_numbers = #tpu.dot_dimension_numbers<[1], [0], [0], [1], [0, 0, 1, 1], [], []>} : vector<64x128xf32>, vector<128x32xf32>, vector<64x32xf32> -> vector<64x32xf32>
    %c0_21 = arith.constant 0 : index
    %c0_22 = arith.constant 0 : index
    %43 = vector.load %arg7[%c0_21, %c0_22] : memref<1x32xf32, #tpu.memory_space<vmem>>, vector<1x32xf32>
    %44 = vector.broadcast %43 : vector<1x32xf32> to vector<64x32xf32>
    %45 = arith.addf %42, %44 : vector<64x32xf32>
    %46 = arith.addf %22, %45 : vector<64x32xf32>
    %cst_23 = arith.constant dense<0.000000e+00> : vector<64xf32>
    %47 = vector.multi_reduction <add>, %46, %cst_23 [1] : vector<64x32xf32> to vector<64xf32>
    %48 = vector.shape_cast %47 : vector<64xf32> to vector<64x1xf32>
    %cst_24 = arith.constant 3.200000e+01 : f32
    %49 = vector.broadcast %cst_24 : f32 to vector<64x1xf32>
    %50 = arith.divf %48, %49 : vector<64x1xf32>
    %51 = vector.broadcast %50 : vector<64x1xf32> to vector<64x32xf32>
    %52 = arith.subf %46, %51 : vector<64x32xf32>
    %53 = arith.mulf %52, %52 : vector<64x32xf32>
    %cst_25 = arith.constant dense<0.000000e+00> : vector<64xf32>
    %54 = vector.multi_reduction <add>, %53, %cst_25 [1] : vector<64x32xf32> to vector<64xf32>
    %55 = vector.shape_cast %54 : vector<64xf32> to vector<64x1xf32>
    %cst_26 = arith.constant 3.200000e+01 : f32
    %56 = vector.broadcast %cst_26 : f32 to vector<64x1xf32>
    %57 = arith.divf %55, %56 : vector<64x1xf32>
    %cst_27 = arith.constant 9.99999974E-6 : f32
    %58 = vector.broadcast %cst_27 : f32 to vector<64x1xf32>
    %59 = arith.addf %57, %58 : vector<64x1xf32>
    %60 = math.rsqrt %59 : vector<64x1xf32>
    %61 = vector.broadcast %60 : vector<64x1xf32> to vector<64x32xf32>
    %62 = arith.mulf %52, %61 : vector<64x32xf32>
    %c0_28 = arith.constant 0 : index
    %c0_29 = arith.constant 0 : index
    %63 = vector.load %arg8[%c0_28, %c0_29] : memref<1x32xf32, #tpu.memory_space<vmem>>, vector<1x32xf32>
    %64 = vector.broadcast %63 : vector<1x32xf32> to vector<64x32xf32>
    %65 = arith.mulf %62, %64 : vector<64x32xf32>
    %c0_30 = arith.constant 0 : index
    %c0_31 = arith.constant 0 : index
    %66 = vector.load %arg9[%c0_30, %c0_31] : memref<1x32xf32, #tpu.memory_space<vmem>>, vector<1x32xf32>
    %67 = vector.broadcast %66 : vector<1x32xf32> to vector<64x32xf32>
    %68 = arith.addf %65, %67 : vector<64x32xf32>
    %c0_32 = arith.constant 0 : index
    %c0_33 = arith.constant 0 : index
    %69 = vector.load %arg10[%c0_32, %c0_33] : memref<64x32xf32, #tpu.memory_space<vmem>>, vector<64x32xf32>
    tpu.vector_store %arg10[%c0_32, %c0_33], %68 {strides = array<i32>} : memref<64x32xf32, #tpu.memory_space<vmem>>, vector<64x32xf32>,
    return
  }
  func.func @transform_0(%arg0: i32) -> (i32, i32) {
    %c0_i32 = arith.constant 0 : i32
    %c0_i32_0 = arith.constant 0 : i32
    return %arg0, %c0_i32 : i32, i32
  }
  func.func @transform_1(%arg0: i32) -> (i32, i32) {
    %c0_i32 = arith.constant 0 : i32
    %c0_i32_0 = arith.constant 0 : i32
    %c0_i32_1 = arith.constant 0 : i32
    return %c0_i32, %c0_i32_0 : i32, i32
  }
  func.func @transform_2(%arg0: i32) -> (i32, i32) {
    %c0_i32 = arith.constant 0 : i32
    %c0_i32_0 = arith.constant 0 : i32
    %c0_i32_1 = arith.constant 0 : i32
    return %c0_i32, %c0_i32_0 : i32, i32
  }
  func.func @transform_3(%arg0: i32) -> (i32, i32) {
    %c0_i32 = arith.constant 0 : i32
    %c0_i32_0 = arith.constant 0 : i32
    %c0_i32_1 = arith.constant 0 : i32
    return %c0_i32, %c0_i32_0 : i32, i32
  }
  func.func @transform_4(%arg0: i32) -> (i32, i32) {
    %c0_i32 = arith.constant 0 : i32
    %c0_i32_0 = arith.constant 0 : i32
    %c0_i32_1 = arith.constant 0 : i32
    return %c0_i32, %c0_i32_0 : i32, i32
  }
  func.func @transform_5(%arg0: i32) -> (i32, i32) {
    %c0_i32 = arith.constant 0 : i32
    %c0_i32_0 = arith.constant 0 : i32
    %c0_i32_1 = arith.constant 0 : i32
    return %c0_i32, %c0_i32_0 : i32, i32
  }
  func.func @transform_6(%arg0: i32) -> (i32, i32) {
    %c0_i32 = arith.constant 0 : i32
    %c0_i32_0 = arith.constant 0 : i32
    %c0_i32_1 = arith.constant 0 : i32
    return %c0_i32, %c0_i32_0 : i32, i32
  }
  func.func @transform_7(%arg0: i32) -> (i32, i32) {
    %c0_i32 = arith.constant 0 : i32
    %c0_i32_0 = arith.constant 0 : i32
    %c0_i32_1 = arith.constant 0 : i32
    return %c0_i32, %c0_i32_0 : i32, i32
  }
  func.func @transform_8(%arg0: i32) -> (i32, i32) {
    %c0_i32 = arith.constant 0 : i32
    %c0_i32_0 = arith.constant 0 : i32
    %c0_i32_1 = arith.constant 0 : i32
    return %c0_i32, %c0_i32_0 : i32, i32
  }
  func.func @transform_9(%arg0: i32) -> (i32, i32) {
    %c0_i32 = arith.constant 0 : i32
    %c0_i32_0 = arith.constant 0 : i32
    return %arg0, %c0_i32 : i32, i32
  }
}

module attributes {stable_mosaic.version = 11 : i64} {
  func.func @_fused_ln_mlp_ln_kernel(%arg0: i32, %arg1: memref<64x32xf32, #tpu.memory_space<vmem>>, %arg2: memref<1x32xf32, #tpu.memory_space<vmem>>, %arg3: memref<1x32xf32, #tpu.memory_space<vmem>>, %arg4: memref<32x128xf32, #tpu.memory_space<vmem>>, %arg5: memref<1x128xf32, #tpu.memory_space<vmem>>, %arg6: memref<128x32xf32, #tpu.memory_space<vmem>>, %arg7: memref<1x32xf32, #tpu.memory_space<vmem>>, %arg8: memref<1x32xf32, #tpu.memory_space<vmem>>, %arg9: memref<1x32xf32, #tpu.memory_space<vmem>>, %arg10: memref<64x32xf32, #tpu.memory_space<vmem>>) attributes {dimension_semantics = [#tpu.dimension_semantics<parallel>], iteration_bounds = array<i64: 8>, scalar_prefetch = 0 : i64, scratch_operands = 0 : i64, tpu.core_type = #tpu.core_type<tc>, window_params = [{transform_indices = @transform_0, window_bounds = array<i64: 64, 32>}, {pipeline_mode = #tpu.pipeline_mode<synchronous>, transform_indices = @transform_1, window_bounds = array<i64: 1, 32>}, {pipeline_mode = #tpu.pipeline_mode<synchronous>, transform_indices = @transform_2, window_bounds = array<i64: 1, 32>}, {pipeline_mode = #tpu.pipeline_mode<synchronous>, transform_indices = @transform_3, window_bounds = array<i64: 32, 128>}, {pipeline_mode = #tpu.pipeline_mode<synchronous>, transform_indices = @transform_4, window_bounds = array<i64: 1, 128>}, {pipeline_mode = #tpu.pipeline_mode<synchronous>, transform_indices = @transform_5, window_bounds = array<i64: 128, 32>}, {pipeline_mode = #tpu.pipeline_mode<synchronous>, transform_indices = @transform_6, window_bounds = array<i64: 1, 32>}, {pipeline_mode = #tpu.pipeline_mode<synchronous>, transform_indices = @transform_7, window_bounds = array<i64: 1, 32>}, {pipeline_mode = #tpu.pipeline_mode<synchronous>, transform_indices = @transform_8, window_bounds = array<i64: 1, 32>}, {transform_indices = @transform_9, window_bounds = array<i64: 64, 32>}]} {
    %c0 = arith.constant 0 : index
    %c0_0 = arith.constant 0 : index
    %0 = vector.load %arg1[%c0, %c0_0] : memref<64x32xf32, #tpu.memory_space<vmem>>, vector<64x32xf32>
    %cst = arith.constant dense<0.000000e+00> : vector<64xf32>
    %1 = vector.multi_reduction <add>, %0, %cst [1] : vector<64x32xf32> to vector<64xf32>
    %2 = vector.shape_cast %1 : vector<64xf32> to vector<64x1xf32>
    %cst_1 = arith.constant 3.200000e+01 : f32
    %3 = vector.broadcast %cst_1 : f32 to vector<64x1xf32>
    %4 = arith.divf %2, %3 : vector<64x1xf32>
    %5 = vector.broadcast %4 : vector<64x1xf32> to vector<64x32xf32>
    %6 = arith.subf %0, %5 : vector<64x32xf32>
    %7 = arith.mulf %6, %6 : vector<64x32xf32>
    %cst_2 = arith.constant dense<0.000000e+00> : vector<64xf32>
    %8 = vector.multi_reduction <add>, %7, %cst_2 [1] : vector<64x32xf32> to vector<64xf32>
    %9 = vector.shape_cast %8 : vector<64xf32> to vector<64x1xf32>
    %cst_3 = arith.constant 3.200000e+01 : f32
    %10 = vector.broadcast %cst_3 : f32 to vector<64x1xf32>
    %11 = arith.divf %9, %10 : vector<64x1xf32>
    %cst_4 = arith.constant 9.99999974E-6 : f32
    %12 = vector.broadcast %cst_4 : f32 to vector<64x1xf32>
    %13 = arith.addf %11, %12 : vector<64x1xf32>
    %14 = math.rsqrt %13 : vector<64x1xf32>
    %15 = vector.broadcast %14 : vector<64x1xf32> to vector<64x32xf32>
    %16 = arith.mulf %6, %15 : vector<64x32xf32>
    %c0_5 = arith.constant 0 : index
    %c0_6 = arith.constant 0 : index
    %17 = vector.load %arg2[%c0_5, %c0_6] : memref<1x32xf32, #tpu.memory_space<vmem>>, vector<1x32xf32>
    %18 = vector.broadcast %17 : vector<1x32xf32> to vector<64x32xf32>
    %19 = arith.mulf %16, %18 : vector<64x32xf32>
    %c0_7 = arith.constant 0 : index
    %c0_8 = arith.constant 0 : index
    %20 = vector.load %arg3[%c0_7, %c0_8] : memref<1x32xf32, #tpu.memory_space<vmem>>, vector<1x32xf32>
    %21 = vector.broadcast %20 : vector<1x32xf32> to vector<64x32xf32>
    %22 = arith.addf %19, %21 : vector<64x32xf32>
    %c0_9 = arith.constant 0 : index
    %c0_10 = arith.constant 0 : index
    %23 = vector.load %arg4[%c0_9, %c0_10] : memref<32x128xf32, #tpu.memory_space<vmem>>, vector<32x128xf32>
    %cst_11 = arith.constant dense<0.000000e+00> : vector<64x128xf32>
    %24 = tpu.matmul %22, %23, %cst_11 {dimension_numbers = #tpu.dot_dimension_numbers<[1], [0], [0], [1], [0, 0, 1, 1], [], []>} : vector<64x32xf32>, vector<32x128xf32>, vector<64x128xf32> -> vector<64x128xf32>
    %c0_12 = arith.constant 0 : index
    %c0_13 = arith.constant 0 : index
    %25 = vector.load %arg5[%c0_12, %c0_13] : memref<1x128xf32, #tpu.memory_space<vmem>>, vector<1x128xf32>
    %26 = vector.broadcast %25 : vector<1x128xf32> to vector<64x128xf32>
    %27 = arith.addf %24, %26 : vector<64x128xf32>
    %28 = arith.mulf %27, %27 : vector<64x128xf32>
    %29 = arith.mulf %27, %28 : vector<64x128xf32>
    %cst_14 = arith.constant 4.471500e-02 : f32
    %30 = vector.broadcast %cst_14 : f32 to vector<64x128xf32>
    %31 = arith.mulf %30, %29 : vector<64x128xf32>
    %32 = arith.addf %27, %31 : vector<64x128xf32>
    %cst_15 = arith.constant 0.797884583 : f32
    %33 = vector.broadcast %cst_15 : f32 to vector<64x128xf32>
    %34 = arith.mulf %33, %32 : vector<64x128xf32>
    %35 = math.tanh %34 : vector<64x128xf32>
    %cst_16 = arith.constant 1.000000e+00 : f32
    %36 = vector.broadcast %cst_16 : f32 to vector<64x128xf32>
    %37 = arith.addf %36, %35 : vector<64x128xf32>
    %cst_17 = arith.constant 5.000000e-01 : f32
    %38 = vector.broadcast %cst_17 : f32 to vector<64x128xf32>
    %39 = arith.mulf %38, %37 : vector<64x128xf32>
    %40 = arith.mulf %27, %39 : vector<64x128xf32>
    %c0_18 = arith.constant 0 : index
    %c0_19 = arith.constant 0 : index
    %41 = vector.load %arg6[%c0_18, %c0_19] : memref<128x32xf32, #tpu.memory_space<vmem>>, vector<128x32xf32>
    %cst_20 = arith.constant dense<0.000000e+00> : vector<64x32xf32>
    %42 = tpu.matmul %40, %41, %cst_20 {dimension_numbers = #tpu.dot_dimension_numbers<[1], [0], [0], [1], [0, 0, 1, 1], [], []>} : vector<64x128xf32>, vector<128x32xf32>, vector<64x32xf32> -> vector<64x32xf32>
    %c0_21 = arith.constant 0 : index
    %c0_22 = arith.constant 0 : index
    %43 = vector.load %arg7[%c0_21, %c0_22] : memref<1x32xf32, #tpu.memory_space<vmem>>, vector<1x32xf32>
    %44 = vector.broadcast %43 : vector<1x32xf32> to vector<64x32xf32>
    %45 = arith.addf %42, %44 : vector<64x32xf32>
    %46 = arith.addf %22, %45 : vector<64x32xf32>
    %cst_23 = arith.constant dense<0.000000e+00> : vector<64xf32>
    %47 = vector.multi_reduction <add>, %46, %cst_23 [1] : vector<64x32xf32> to vector<64xf32>
    %48 = vector.shape_cast %47 : vector<64xf32> to vector<64x1xf32>
    %cst_24 = arith.constant 3.200000e+01 : f32
    %49 = vector.broadcast %cst_24 : f32 to vector<64x1xf32>
    %50 = arith.divf %48, %49 : vector<64x1xf32>
    %51 = vector.broadcast %50 : vector<64x1xf32> to vector<64x32xf32>
    %52 = arith.subf %46, %51 : vector<64x32xf32>
    %53 = arith.mulf %52, %52 : vector<64x32xf32>
    %cst_25 = arith.constant dense<0.000000e+00> : vector<64xf32>
    %54 = vector.multi_reduction <add>, %53, %cst_25 [1] : vector<64x32xf32> to vector<64xf32>
    %55 = vector.shape_cast %54 : vector<64xf32> to vector<64x1xf32>
    %cst_26 = arith.constant 3.200000e+01 : f32
    %56 = vector.broadcast %cst_26 : f32 to vector<64x1xf32>
    %57 = arith.divf %55, %56 : vector<64x1xf32>
    %cst_27 = arith.constant 9.99999974E-6 : f32
    %58 = vector.broadcast %cst_27 : f32 to vector<64x1xf32>
    %59 = arith.addf %57, %58 : vector<64x1xf32>
    %60 = math.rsqrt %59 : vector<64x1xf32>
    %61 = vector.broadcast %60 : vector<64x1xf32> to vector<64x32xf32>
    %62 = arith.mulf %52, %61 : vector<64x32xf32>
    %c0_28 = arith.constant 0 : index
    %c0_29 = arith.constant 0 : index
    %63 = vector.load %arg8[%c0_28, %c0_29] : memref<1x32xf32, #tpu.memory_space<vmem>>, vector<1x32xf32>
    %64 = vector.broadcast %63 : vector<1x32xf32> to vector<64x32xf32>
    %65 = arith.mulf %62, %64 : vector<64x32xf32>
    %c0_30 = arith.constant 0 : index
    %c0_31 = arith.constant 0 : index
    %66 = vector.load %arg9[%c0_30, %c0_31] : memref<1x32xf32, #tpu.memory_space<vmem>>, vector<1x32xf32>
    %67 = vector.broadcast %66 : vector<1x32xf32> to vector<64x32xf32>
    %68 = arith.addf %65, %67 : vector<64x32xf32>
    %c0_32 = arith.constant 0 : index
    %c0_33 = arith.constant 0 : index
    %69 = vector.load %arg10[%c0_32, %c0_33] : memref<64x32xf32, #tpu.memory_space<vmem>>, vector<64x32xf32>
    tpu.vector_store %arg10[%c0_32, %c0_33], %68 {strides = array<i32>} : memref<64x32xf32, #tpu.memory_space<vmem>>, vector<64x32xf32>,
    return
  }
  func.func @transform_0(%arg0: i32) -> (i32, i32) {
    %c0_i32 = arith.constant 0 : i32
    %c0_i32_0 = arith.constant 0 : i32
    return %arg0, %c0_i32 : i32, i32
  }
  func.func @transform_1(%arg0: i32) -> (i32, i32) {
    %c0_i32 = arith.constant 0 : i32
    %c0_i32_0 = arith.constant 0 : i32
    %c0_i32_1 = arith.constant 0 : i32
    return %c0_i32, %c0_i32_0 : i32, i32
  }
  func.func @transform_2(%arg0: i32) -> (i32, i32) {
    %c0_i32 = arith.constant 0 : i32
    %c0_i32_0 = arith.constant 0 : i32
    %c0_i32_1 = arith.constant 0 : i32
    return %c0_i32, %c0_i32_0 : i32, i32
  }
  func.func @transform_3(%arg0: i32) -> (i32, i32) {
    %c0_i32 = arith.constant 0 : i32
    %c0_i32_0 = arith.constant 0 : i32
    %c0_i32_1 = arith.constant 0 : i32
    return %c0_i32, %c0_i32_0 : i32, i32
  }
  func.func @transform_4(%arg0: i32) -> (i32, i32) {
    %c0_i32 = arith.constant 0 : i32
    %c0_i32_0 = arith.constant 0 : i32
    %c0_i32_1 = arith.constant 0 : i32
    return %c0_i32, %c0_i32_0 : i32, i32
  }
  func.func @transform_5(%arg0: i32) -> (i32, i32) {
    %c0_i32 = arith.constant 0 : i32
    %c0_i32_0 = arith.constant 0 : i32
    %c0_i32_1 = arith.constant 0 : i32
    return %c0_i32, %c0_i32_0 : i32, i32
  }
  func.func @transform_6(%arg0: i32) -> (i32, i32) {
    %c0_i32 = arith.constant 0 : i32
    %c0_i32_0 = arith.constant 0 : i32
    %c0_i32_1 = arith.constant 0 : i32
    return %c0_i32, %c0_i32_0 : i32, i32
  }
  func.func @transform_7(%arg0: i32) -> (i32, i32) {
    %c0_i32 = arith.constant 0 : i32
    %c0_i32_0 = arith.constant 0 : i32
    %c0_i32_1 = arith.constant 0 : i32
    return %c0_i32, %c0_i32_0 : i32, i32
  }
  func.func @transform_8(%arg0: i32) -> (i32, i32) {
    %c0_i32 = arith.constant 0 : i32
    %c0_i32_0 = arith.constant 0 : i32
    %c0_i32_1 = arith.constant 0 : i32
    return %c0_i32, %c0_i32_0 : i32, i32
  }
  func.func @transform_9(%arg0: i32) -> (i32, i32) {
    %c0_i32 = arith.constant 0 : i32
    %c0_i32_0 = arith.constant 0 : i32
    return %arg0, %c0_i32 : i32, i32
  }
}

</mosaic_0001>

<llo_original>
// kernel: fused_ln_mlp_ln.1
$region0: #{fused_ln_mlp_ln.1}
  #allocation0 [shape = 'u32[]', space=smem, size = 0x4, offset = 0x4, fixed_abs, tag = 'smem constant byte address 0x4 - core index']
  #allocation1 [shape = 'u32[144,128]{1,0:T(1,128)}', space=vmem, size = 0x12000, scoped, tag = 'internal scratch']
  %s0 = inlined_call_operand.vmem [shape: f32[512,32], index: 0, kind: input, shape index: {}]
  %s1 = inlined_call_operand.vmem [shape: f32[1,32], index: 1, kind: input, shape index: {}]
  %s2 = inlined_call_operand.vmem [shape: f32[1,32], index: 2, kind: input, shape index: {}]
  %s3 = inlined_call_operand.vmem [shape: f32[32,128], index: 3, kind: input, shape index: {}]
  %s4 = inlined_call_operand.vmem [shape: f32[1,128], index: 4, kind: input, shape index: {}]
  %s5 = inlined_call_operand.vmem [shape: f32[128,32], index: 5, kind: input, shape index: {}]
  %s6 = inlined_call_operand.vmem [shape: f32[1,32], index: 6, kind: input, shape index: {}]
  %s7 = inlined_call_operand.vmem [shape: f32[1,32], index: 7, kind: input, shape index: {}]
  %s8 = inlined_call_operand.vmem [shape: f32[1,32], index: 8, kind: input, shape index: {}]
  %s9 = inlined_call_operand.vmem [shape: f32[512,32], index: 9, kind: output, shape index: {}]
  %s10 = sld [smem:[#allocation0]]
  $region69: #{fused_ln_mlp_ln.1} parent=0
    _
  %s12 = ssub.s32 1, %s10
  %s13 = scalar_select 0, %s12, %s10
  loop: start=0, step=1, limit=10
  $region2: #{fused_ln_mlp_ln.1} parent=0 // loop_pre_header
    _
  $region3: #{fused_ln_mlp_ln.1} parent=0 // loop_header
    %s15 = sphi 0, %s19
    %p16 = scmp.ge.s32.totalorder %s15, 10
    %s25 = sphi 0, %s27
    %s28 = sphi 0, %s25
    %s29 = sphi 0, %s28
    %s45 = sphi 0, %s29
    %s49 = sphi 0, %s49
    %s51 = sphi 0, %s49
    %s52 = sphi 0, %s51
    %s66 = sphi 0, %s52
    %s70 = sphi 0, %s70
    %s72 = sphi 0, %s70
    %s73 = sphi 0, %s72
    %s87 = sphi 0, %s73
    %s91 = sphi 0, %s91
    %s93 = sphi 0, %s91
    %s94 = sphi 0, %s93
    %s108 = sphi 0, %s94
    %s112 = sphi 0, %s112
    %s114 = sphi 0, %s112
    %s115 = sphi 0, %s114
    %s129 = sphi 0, %s115
    %s133 = sphi 0, %s133
    %s135 = sphi 0, %s133
    %s136 = sphi 0, %s135
    %s150 = sphi 0, %s136
    %s154 = sphi 0, %s154
    %s156 = sphi 0, %s154
    %s157 = sphi 0, %s156
    %s171 = sphi 0, %s157
    %s175 = sphi 0, %s175
    %s177 = sphi 0, %s175
    %s178 = sphi 0, %s177
    %s192 = sphi 0, %s178
    %s196 = sphi 0, %s196
    %s198 = sphi 0, %s196
    %s199 = sphi 0, %s198
    %s213 = sphi 0, %s199
    %s219 = sphi 0, %s221
    %s222 = sphi 0, %s219
    %s223 = sphi 0, %s222
    %s239 = sphi 0, %s223
  $region4: #{fused_ln_mlp_ln.1} parent=0 // loop_header_branch
    %18 = sbr.rel (%p16) target = $region8
  $region5: #{fused_ln_mlp_ln.1} parent=0 // loop_body
    %s20 = ssub.s32 %s15, 1
    %s21 = ssub.s32 %s15, 2
    %s22 = sadd.s32 %s15, 1
    %s23 = ssub.s32 %s15, %s22
    %p24 = scmp.eq.s32.totalorder %s23, 0
    %s26 = sadd.s32 %s25, 1
    %s27 = scalar_select %p24, %s25, %s26
    %p30 = pneg %p24
    %p31 = scmp.eq.s32.totalorder %s15, 7
    %p32 = por %p30, %p31
    %p33 = scmp.ne.s32.totalorder %s25, %s28
    %p34 = scmp.eq.s32.totalorder %s15, 0
    %p35 = por %p33, %p34
    %p36 = scmp.ne.s32.totalorder %s25, %s28
    %p37 = scmp.eq.s32.totalorder %s20, 7
    %p38 = por %p36, %p37
    %p39 = scmp.ne.s32.totalorder %s28, %s29
    %p40 = scmp.eq.s32.totalorder %s20, 0
    %p41 = por %p39, %p40
    %p42 = scmp.ne.s32.totalorder %s28, %s29
    %p43 = scmp.eq.s32.totalorder %s21, 7
    %p44 = por %p42, %p43
    %p46 = scmp.ne.s32.totalorder %s29, %s45
    %p47 = scmp.eq.s32.totalorder %s21, 0
    %p48 = por %p46, %p47
    %s50 = sadd.s32 %s49, 1
    %p53 = scmp.eq.s32.totalorder %s15, 7
    %p54 = scmp.ne.s32.totalorder %s49, %s51
    %p55 = scmp.eq.s32.totalorder %s15, 0
    %p56 = por %p54, %p55
    %p57 = scmp.ne.s32.totalorder %s49, %s51
    %p58 = scmp.eq.s32.totalorder %s20, 7
    %p59 = por %p57, %p58
    %p60 = scmp.ne.s32.totalorder %s51, %s52
    %p61 = scmp.eq.s32.totalorder %s20, 0
    %p62 = por %p60, %p61
    %p63 = scmp.ne.s32.totalorder %s51, %s52
    %p64 = scmp.eq.s32.totalorder %s21, 7
    %p65 = por %p63, %p64
    %p67 = scmp.ne.s32.totalorder %s52, %s66
    %p68 = scmp.eq.s32.totalorder %s21, 0
    %p69 = por %p67, %p68
    %s71 = sadd.s32 %s70, 1
    %p74 = scmp.eq.s32.totalorder %s15, 7
    %p75 = scmp.ne.s32.totalorder %s70, %s72
    %p76 = scmp.eq.s32.totalorder %s15, 0
    %p77 = por %p75, %p76
    %p78 = scmp.ne.s32.totalorder %s70, %s72
    %p79 = scmp.eq.s32.totalorder %s20, 7
    %p80 = por %p78, %p79
    %p81 = scmp.ne.s32.totalorder %s72, %s73
    %p82 = scmp.eq.s32.totalorder %s20, 0
    %p83 = por %p81, %p82
    %p84 = scmp.ne.s32.totalorder %s72, %s73
    %p85 = scmp.eq.s32.totalorder %s21, 7
    %p86 = por %p84, %p85
    %p88 = scmp.ne.s32.totalorder %s73, %s87
    %p89 = scmp.eq.s32.totalorder %s21, 0
    %p90 = por %p88, %p89
    %s92 = sadd.s32 %s91, 1
    %p95 = scmp.eq.s32.totalorder %s15, 7
    %p96 = scmp.ne.s32.totalorder %s91, %s93
    %p97 = scmp.eq.s32.totalorder %s15, 0
    %p98 = por %p96, %p97
    %p99 = scmp.ne.s32.totalorder %s91, %s93
    %p100 = scmp.eq.s32.totalorder %s20, 7
    %p101 = por %p99, %p100
    %p102 = scmp.ne.s32.totalorder %s93, %s94
    %p103 = scmp.eq.s32.totalorder %s20, 0
    %p104 = por %p102, %p103
    %p105 = scmp.ne.s32.totalorder %s93, %s94
    %p106 = scmp.eq.s32.totalorder %s21, 7
    %p107 = por %p105, %p106
    %p109 = scmp.ne.s32.totalorder %s94, %s108
    %p110 = scmp.eq.s32.totalorder %s21, 0
    %p111 = por %p109, %p110
    %s113 = sadd.s32 %s112, 1
    %p116 = scmp.eq.s32.totalorder %s15, 7
    %p117 = scmp.ne.s32.totalorder %s112, %s114
    %p118 = scmp.eq.s32.totalorder %s15, 0
    %p119 = por %p117, %p118
    %p120 = scmp.ne.s32.totalorder %s112, %s114
    %p121 = scmp.eq.s32.totalorder %s20, 7
    %p122 = por %p120, %p121
    %p123 = scmp.ne.s32.totalorder %s114, %s115
    %p124 = scmp.eq.s32.totalorder %s20, 0
    %p125 = por %p123, %p124
    %p126 = scmp.ne.s32.totalorder %s114, %s115
    %p127 = scmp.eq.s32.totalorder %s21, 7
    %p128 = por %p126, %p127
    %p130 = scmp.ne.s32.totalorder %s115, %s129
    %p131 = scmp.eq.s32.totalorder %s21, 0
    %p132 = por %p130, %p131
    %s134 = sadd.s32 %s133, 1
    %p137 = scmp.eq.s32.totalorder %s15, 7
    %p138 = scmp.ne.s32.totalorder %s133, %s135
    %p139 = scmp.eq.s32.totalorder %s15, 0
    %p140 = por %p138, %p139
    %p141 = scmp.ne.s32.totalorder %s133, %s135
    %p142 = scmp.eq.s32.totalorder %s20, 7
    %p143 = por %p141, %p142
    %p144 = scmp.ne.s32.totalorder %s135, %s136
    %p145 = scmp.eq.s32.totalorder %s20, 0
    %p146 = por %p144, %p145
    %p147 = scmp.ne.s32.totalorder %s135, %s136
    %p148 = scmp.eq.s32.totalorder %s21, 7
    %p149 = por %p147, %p148
    %p151 = scmp.ne.s32.totalorder %s136, %s150
    %p152 = scmp.eq.s32.totalorder %s21, 0
    %p153 = por %p151, %p152
    %s155 = sadd.s32 %s154, 1
    %p158 = scmp.eq.s32.totalorder %s15, 7
    %p159 = scmp.ne.s32.totalorder %s154, %s156
    %p160 = scmp.eq.s32.totalorder %s15, 0
    %p161 = por %p159, %p160
    %p162 = scmp.ne.s32.totalorder %s154, %s156
    %p163 = scmp.eq.s32.totalorder %s20, 7
    %p164 = por %p162, %p163
    %p165 = scmp.ne.s32.totalorder %s156, %s157
    %p166 = scmp.eq.s32.totalorder %s20, 0
    %p167 = por %p165, %p166
    %p168 = scmp.ne.s32.totalorder %s156, %s157
    %p169 = scmp.eq.s32.totalorder %s21, 7
    %p170 = por %p168, %p169
    %p172 = scmp.ne.s32.totalorder %s157, %s171
    %p173 = scmp.eq.s32.totalorder %s21, 0
    %p174 = por %p172, %p173
    %s176 = sadd.s32 %s175, 1
    %p179 = scmp.eq.s32.totalorder %s15, 7
    %p180 = scmp.ne.s32.totalorder %s175, %s177
    %p181 = scmp.eq.s32.totalorder %s15, 0
    %p182 = por %p180, %p181
    %p183 = scmp.ne.s32.totalorder %s175, %s177
    %p184 = scmp.eq.s32.totalorder %s20, 7
    %p185 = por %p183, %p184
    %p186 = scmp.ne.s32.totalorder %s177, %s178
    %p187 = scmp.eq.s32.totalorder %s20, 0
    %p188 = por %p186, %p187
    %p189 = scmp.ne.s32.totalorder %s177, %s178
    %p190 = scmp.eq.s32.totalorder %s21, 7
    %p191 = por %p189, %p190
    %p193 = scmp.ne.s32.totalorder %s178, %s192
    %p194 = scmp.eq.s32.totalorder %s21, 0
    %p195 = por %p193, %p194
    %s197 = sadd.s32 %s196, 1
    %p200 = scmp.eq.s32.totalorder %s15, 7
    %p201 = scmp.ne.s32.totalorder %s196, %s198
    %p202 = scmp.eq.s32.totalorder %s15, 0
    %p203 = por %p201, %p202
    %p204 = scmp.ne.s32.totalorder %s196, %s198
    %p205 = scmp.eq.s32.totalorder %s20, 7
    %p206 = por %p204, %p205
    %p207 = scmp.ne.s32.totalorder %s198, %s199
    %p208 = scmp.eq.s32.totalorder %s20, 0
    %p209 = por %p207, %p208
    %p210 = scmp.ne.s32.totalorder %s198, %s199
    %p211 = scmp.eq.s32.totalorder %s21, 7
    %p212 = por %p210, %p211
    %p214 = scmp.ne.s32.totalorder %s199, %s213
    %p215 = scmp.eq.s32.totalorder %s21, 0
    %p216 = por %p214, %p215
    %s217 = ssub.s32 %s15, %s22
    %p218 = scmp.eq.s32.totalorder %s217, 0
    %s220 = sadd.s32 %s219, 1
    %s221 = scalar_select %p218, %s219, %s220
    %p224 = pneg %p218
    %p225 = scmp.eq.s32.totalorder %s15, 7
    %p226 = por %p224, %p225
    %p227 = scmp.ne.s32.totalorder %s219, %s222
    %p228 = scmp.eq.s32.totalorder %s15, 0
    %p229 = por %p227, %p228
    %p230 = scmp.ne.s32.totalorder %s219, %s222
    %p231 = scmp.eq.s32.totalorder %s20, 7
    %p232 = por %p230, %p231
    %p233 = scmp.ne.s32.totalorder %s222, %s223
    %p234 = scmp.eq.s32.totalorder %s20, 0
    %p235 = por %p233, %p234
    %p236 = scmp.ne.s32.totalorder %s222, %s223
    %p237 = scmp.eq.s32.totalorder %s21, 7
    %p238 = por %p236, %p237
    %p240 = scmp.ne.s32.totalorder %s223, %s239
    %p241 = scmp.eq.s32.totalorder %s21, 0
    %p242 = por %p240, %p241
    %p243 = scmp.le.s32.totalorder 1, %s15
    %p244 = scmp.lt.s32.totalorder %s15, 9
    %p245 = pnand %p243, %p244
    %p246 = pneg %p245
    // Predicated region
    $region9: #{fused_ln_mlp_ln.1} parent=5 // pred_check
      _
    $region10: #{fused_ln_mlp_ln.1} parent=5 // pred_check_branch
      %248 = sbr.rel (%p245) target = $region12
    $region11: #{fused_ln_mlp_ln.1} parent=5 // pred_region
      %s249 = ssub.s32 %s15, 1
      // Predicated region
      $region13: #{fused_ln_mlp_ln.1} parent=11 // pred_check
        %p250 = pneg %p62
      $region14: #{fused_ln_mlp_ln.1} parent=11 // pred_check_branch
        %252 = sbr.rel (%p250) target = $region16
      $region15: #{fused_ln_mlp_ln.1} parent=11 // pred_region
        _
      $region16: #{fused_ln_mlp_ln.1} parent=11 // pred_fallthru
        _
      // Predicated region
      $region17: #{fused_ln_mlp_ln.1} parent=11 // pred_check
        %p253 = pneg %p83
      $region18: #{fused_ln_mlp_ln.1} parent=11 // pred_check_branch
        %255 = sbr.rel (%p253) target = $region20
      $region19: #{fused_ln_mlp_ln.1} parent=11 // pred_region
        _
      $region20: #{fused_ln_mlp_ln.1} parent=11 // pred_fallthru
        _
      // Predicated region
      $region21: #{fused_ln_mlp_ln.1} parent=11 // pred_check
        %p256 = pneg %p104
      $region22: #{fused_ln_mlp_ln.1} parent=11 // pred_check_branch
        %258 = sbr.rel (%p256) target = $region24
      $region23: #{fused_ln_mlp_ln.1} parent=11 // pred_region
        _
      $region24: #{fused_ln_mlp_ln.1} parent=11 // pred_fallthru
        _
      // Predicated region
      $region25: #{fused_ln_mlp_ln.1} parent=11 // pred_check
        %p259 = pneg %p125
      $region26: #{fused_ln_mlp_ln.1} parent=11 // pred_check_branch
        %261 = sbr.rel (%p259) target = $region28
      $region27: #{fused_ln_mlp_ln.1} parent=11 // pred_region
        _
      $region28: #{fused_ln_mlp_ln.1} parent=11 // pred_fallthru
        _
      // Predicated region
      $region29: #{fused_ln_mlp_ln.1} parent=11 // pred_check
        %p262 = pneg %p146
      $region30: #{fused_ln_mlp_ln.1} parent=11 // pred_check_branch
        %264 = sbr.rel (%p262) target = $region32
      $region31: #{fused_ln_mlp_ln.1} parent=11 // pred_region
        _
      $region32: #{fused_ln_mlp_ln.1} parent=11 // pred_fallthru
        _
      // Predicated region
      $region33: #{fused_ln_mlp_ln.1} parent=11 // pred_check
        %p265 = pneg %p167
      $region34: #{fused_ln_mlp_ln.1} parent=11 // pred_check_branch
        %267 = sbr.rel (%p265) target = $region36
      $region35: #{fused_ln_mlp_ln.1} parent=11 // pred_region
        _
      $region36: #{fused_ln_mlp_ln.1} parent=11 // pred_fallthru
        _
      // Predicated region
      $region37: #{fused_ln_mlp_ln.1} parent=11 // pred_check
        %p268 = pneg %p188
      $region38: #{fused_ln_mlp_ln.1} parent=11 // pred_check_branch
        %270 = sbr.rel (%p268) target = $region40
      $region39: #{fused_ln_mlp_ln.1} parent=11 // pred_region
        _
      $region40: #{fused_ln_mlp_ln.1} parent=11 // pred_fallthru
        _
      // Predicated region
      $region41: #{fused_ln_mlp_ln.1} parent=11 // pred_check
        %p271 = pneg %p209
      $region42: #{fused_ln_mlp_ln.1} parent=11 // pred_check_branch
        %273 = sbr.rel (%p271) target = $region44
      $region43: #{fused_ln_mlp_ln.1} parent=11 // pred_region
        _
      $region44: #{fused_ln_mlp_ln.1} parent=11 // pred_fallthru
        _
    $region12: #{fused_ln_mlp_ln.1} parent=5 // pred_fallthru
      _
    %p274 = scmp.lt.s32.totalorder %s15, 8
    // Predicated region
    $region45: #{fused_ln_mlp_ln.1} parent=5 // pred_check
      %p275 = pneg %p274
    $region46: #{fused_ln_mlp_ln.1} parent=5 // pred_check_branch
      %277 = sbr.rel (%p275) target = $region48
    $region47: #{fused_ln_mlp_ln.1} parent=5 // pred_region
      // Predicated region
      $region49: #{fused_ln_mlp_ln.1} parent=47 // pred_check
        %p278 = pneg %p35
      $region50: #{fused_ln_mlp_ln.1} parent=47 // pred_check_branch
        %280 = sbr.rel (%p278) target = $region52
      $region51: #{fused_ln_mlp_ln.1} parent=47 // pred_region
        %s281 = smul.u32 8, %s15
        %p282 = scmp.lt.s32.totalorder %s281, 63
        %s283 = scalar_select %p282, %s281, 63
        %s284 = smul.addr %s283, 8
        %s285 = scalar_lea.vmem %s0, %s284
        %s286 = smul.u32 8, %s15
      $region52: #{fused_ln_mlp_ln.1} parent=47 // pred_fallthru
        _
    $region48: #{fused_ln_mlp_ln.1} parent=5 // pred_fallthru
      _
    %p287 = scmp.le.s32.totalorder 1, %s15
    %p288 = scmp.lt.s32.totalorder %s15, 9
    %p289 = pnand %p287, %p288
    %p290 = pneg %p289
    // Predicated region
    $region53: #{fused_ln_mlp_ln.1} parent=5 // pred_check
      _
    $region54: #{fused_ln_mlp_ln.1} parent=5 // pred_check_branch
      %292 = sbr.rel (%p289) target = $region56
    $region55: #{fused_ln_mlp_ln.1} parent=5 // pred_region
      %s293 = ssub.s32 %s15, 1
      %s294 = smul.u32 8, %s20
      %p295 = scmp.lt.s32.totalorder %s294, 63
      %s296 = scalar_select %p295, %s294, 63
      %s297 = smul.addr %s296, 8
      %s298 = scalar_lea.vmem %s0, %s297
      %p299 = pneg %p41
      %p300 = pneg %p38
      %p301 = pneg %p62
      %p302 = pneg %p59
      %p303 = pneg %p83
      %p304 = pneg %p80
      %p305 = pneg %p104
      %p306 = pneg %p101
      %p307 = pneg %p125
      %p308 = pneg %p122
      %p309 = pneg %p146
      %p310 = pneg %p143
      %p311 = pneg %p167
      %p312 = pneg %p164
      %p313 = pneg %p188
      %p314 = pneg %p185
      %p315 = pneg %p209
      %p316 = pneg %p206
      %p317 = pneg %p235
      %p318 = pneg %p232
      %s319 = smul.u32 8, %s20
      %p320 = scmp.lt.s32.totalorder %s319, 63
      %s321 = scalar_select %p320, %s319, 63
      %s322 = smul.addr %s321, 8
      %s323 = scalar_lea.vmem %s9, %s322
      %s324 = smul.u32 8, %s20
      %p325 = scmp.lt.s32.totalorder %s324, 63
      %s326 = scalar_select %p325, %s324, 63
      %s327 = smul.addr %s326, 8
      %s328 = scalar_lea.vmem %s0, %s327
      %s329 = smul.u32 8, %s20
      %s330 = smul.u32 8, %s20
      %p331 = scmp.lt.s32.totalorder %s330, 63
      %s332 = scalar_select %p331, %s330, 63
      %s333 = smul.addr %s332, 8
      %s334 = scalar_lea.vmem %s9, %s333
      %s335 = smul.u32 8, %s20
      %v336 = vld [vmem:[%s328] sm:$0xff]
      %v337 = vld [vmem:[%s328 + $0x8] sm:$0xff]
      %v338 = vld [vmem:[%s328 + $0x10] sm:$0xff]
      %v339 = vld [vmem:[%s328 + $0x18] sm:$0xff]
      %v340 = vld [vmem:[%s328 + $0x20] sm:$0xff]
      %v341 = vld [vmem:[%s328 + $0x28] sm:$0xff]
      %v342 = vld [vmem:[%s328 + $0x30] sm:$0xff]
      %v343 = vld [vmem:[%s328 + $0x38] sm:$0xff]
      %vm344 = vcmask 261120
      %v345 = vsel %vm344, %v336, 0.0
      %346 = vadd.xlane.f32.xlu0 %v345
      %v347 = vpop.xlane.xlu0 %346
      %v348 = vsel %vm344, %v337, 0.0
      %349 = vadd.xlane.f32.xlu0 %v348
      %v350 = vpop.xlane.xlu0 %349
      %v351 = vsel %vm344, %v338, 0.0
      %352 = vadd.xlane.f32.xlu0 %v351
      %v353 = vpop.xlane.xlu0 %352
      %v354 = vsel %vm344, %v339, 0.0
      %355 = vadd.xlane.f32.xlu0 %v354
      %v356 = vpop.xlane.xlu0 %355
      %v357 = vsel %vm344, %v340, 0.0
      %358 = vadd.xlane.f32.xlu0 %v357
      %v359 = vpop.xlane.xlu0 %358
      %v360 = vsel %vm344, %v341, 0.0
      %361 = vadd.xlane.f32.xlu0 %v360
      %v362 = vpop.xlane.xlu0 %361
      %v363 = vsel %vm344, %v342, 0.0
      %364 = vadd.xlane.f32.xlu0 %v363
      %v365 = vpop.xlane.xlu0 %364
      %v366 = vsel %vm344, %v343, 0.0
      %367 = vadd.xlane.f32.xlu0 %v366
      %v368 = vpop.xlane.xlu0 %367
      %v369 = vrcp.pop 32.0
      %v370 = vmul.f32 %v347, %v369
      %v371 = vmul.f32 %v350, %v369
      %v372 = vmul.f32 %v353, %v369
      %v373 = vmul.f32 %v356, %v369
      %v374 = vmul.f32 %v359, %v369
      %v375 = vmul.f32 %v362, %v369
      %v376 = vmul.f32 %v365, %v369
      %v377 = vmul.f32 %v368, %v369
      %v378 = vsub.f32 %v336, %v370
      %v379 = vsub.f32 %v337, %v371
      %v380 = vsub.f32 %v338, %v372
      %v381 = vsub.f32 %v339, %v373
      %v382 = vsub.f32 %v340, %v374
      %v383 = vsub.f32 %v341, %v375
      %v384 = vsub.f32 %v342, %v376
      %v385 = vsub.f32 %v343, %v377
      %v386 = vmul.f32 %v378, %v378
      %v387 = vmul.f32 %v379, %v379
      %v388 = vmul.f32 %v380, %v380
      %v389 = vmul.f32 %v381, %v381
      %v390 = vmul.f32 %v382, %v382
      %v391 = vmul.f32 %v383, %v383
      %v392 = vmul.f32 %v384, %v384
      %v393 = vmul.f32 %v385, %v385
      %v394 = vsel %vm344, %v386, 0.0
      %395 = vadd.xlane.f32.xlu0 %v394
      %v396 = vpop.xlane.xlu0 %395
      %v397 = vsel %vm344, %v387, 0.0
      %398 = vadd.xlane.f32.xlu0 %v397
      %v399 = vpop.xlane.xlu0 %398
      %v400 = vsel %vm344, %v388, 0.0
      %401 = vadd.xlane.f32.xlu0 %v400
      %v402 = vpop.xlane.xlu0 %401
      %v403 = vsel %vm344, %v389, 0.0
      %404 = vadd.xlane.f32.xlu0 %v403
      %v405 = vpop.xlane.xlu0 %404
      %v406 = vsel %vm344, %v390, 0.0
      %407 = vadd.xlane.f32.xlu0 %v406
      %v408 = vpop.xlane.xlu0 %407
      %v409 = vsel %vm344, %v391, 0.0
      %410 = vadd.xlane.f32.xlu0 %v409
      %v411 = vpop.xlane.xlu0 %410
      %v412 = vsel %vm344, %v392, 0.0
      %413 = vadd.xlane.f32.xlu0 %v412
      %v414 = vpop.xlane.xlu0 %413
      %v415 = vsel %vm344, %v393, 0.0
      %416 = vadd.xlane.f32.xlu0 %v415
      %v417 = vpop.xlane.xlu0 %416
      %v418 = vmul.f32 %v396, %v369
      %v419 = vmul.f32 %v399, %v369
      %v420 = vmul.f32 %v402, %v369
      %v421 = vmul.f32 %v405, %v369
      %v422 = vmul.f32 %v408, %v369
      %v423 = vmul.f32 %v411, %v369
      %v424 = vmul.f32 %v414, %v369
      %v425 = vmul.f32 %v417, %v369
      %v426 = vadd.f32 %v418, 1e-05
      %v427 = vadd.f32 %v419, 1e-05
      %v428 = vadd.f32 %v420, 1e-05
      %v429 = vadd.f32 %v421, 1e-05
      %v430 = vadd.f32 %v422, 1e-05
      %v431 = vadd.f32 %v423, 1e-05
      %v432 = vadd.f32 %v424, 1e-05
      %v433 = vadd.f32 %v425, 1e-05
      %v434 = vrsqrt.pop %v426
      %v435 = vrsqrt.pop %v427
      %v436 = vrsqrt.pop %v428
      %v437 = vrsqrt.pop %v429
      %v438 = vrsqrt.pop %v430
      %v439 = vrsqrt.pop %v431
      %v440 = vrsqrt.pop %v432
      %v441 = vrsqrt.pop %v433
      %v442 = vmul.f32 %v378, %v434
      %v443 = vmul.f32 %v379, %v435
      %v444 = vmul.f32 %v380, %v436
      %v445 = vmul.f32 %v381, %v437
      %v446 = vmul.f32 %v382, %v438
      %v447 = vmul.f32 %v383, %v439
      %v448 = vmul.f32 %v384, %v440
      %v449 = vmul.f32 %v385, %v441
      %v450 = vld [vmem:[%s1] sm:$0x1]
      %v452 = vlaneseq
      %v453 = vshrl.u32 %v452, 7
      %v454 = vsub.s32 0, %v453
      %v455 = vrot.slane %v450, %v454
      %v457 = vmul.f32 %v442, %v455
      %v458 = vmul.f32 %v443, %v455
      %v459 = vmul.f32 %v444, %v455
      %v460 = vmul.f32 %v445, %v455
      %v461 = vmul.f32 %v446, %v455
      %v462 = vmul.f32 %v447, %v455
      %v463 = vmul.f32 %v448, %v455
      %v464 = vmul.f32 %v449, %v455
      %v465 = vld [vmem:[%s2] sm:$0x1]
      %v467 = vlaneseq
      %v468 = vshrl.u32 %v467, 7
      %v469 = vsub.s32 0, %v468
      %v470 = vrot.slane %v465, %v469
      %v472 = vadd.f32 %v457, %v470
      %v473 = vadd.f32 %v458, %v470
      %v474 = vadd.f32 %v459, %v470
      %v475 = vadd.f32 %v460, %v470
      %v476 = vadd.f32 %v461, %v470
      %v477 = vadd.f32 %v462, %v470
      %v478 = vadd.f32 %v463, %v470
      %v479 = vadd.f32 %v464, %v470
      %v480 = vld [vmem:[%s3] sm:$0xff]
      %v481 = vld [vmem:[%s3 + $0x8] sm:$0xff]
      %v482 = vld [vmem:[%s3 + $0x10] sm:$0xff]
      %v483 = vld [vmem:[%s3 + $0x18] sm:$0xff]
      %v484 = vld [vmem:[%s4] sm:$0x1]
      %v486 = vlaneseq
      %v487 = vshrl.u32 %v486, 7
      %v488 = vsub.s32 0, %v487
      %v489 = vrot.slane %v484, %v488
      %v492 = vsel %vm344, %v472, 0
      %v495 = vsel %vm344, %v473, 0
      %v498 = vsel %vm344, %v474, 0
      %v501 = vsel %vm344, %v475, 0
      %v504 = vsel %vm344, %v476, 0
      %v507 = vsel %vm344, %v477, 0
      %v510 = vsel %vm344, %v478, 0
      %v513 = vsel %vm344, %v479, 0
      %515 = vmatprep.subr.mxu0 0.0
      %516 = vmatpush1.msra.mxu0 %v480
      %517 = vmatprep.subr.mxu0 0.0
      %518 = vmatpush1.msra.mxu0 %v481
      %519 = vmatprep.subr.mxu0 0.0
      %520 = vmatpush1.msra.mxu0 %v482
      %521 = vmatprep.subr.mxu0 0.0
      %522 = vmatpush1.msra.mxu0 %v483
      %523 = vmatprep.subr.mxu0 0.0
      %524 = vmatpush1.msra.mxu0 0.0
      %525 = vmatprep.subr.mxu0 0.0
      %526 = vmatpush1.msra.mxu0 0.0
      %527 = vmatprep.subr.mxu0 0.0
      %528 = vmatpush1.msra.mxu0 0.0
      %529 = vmatprep.subr.mxu0 0.0
      %530 = vmatpush1.msra.mxu0 0.0
      %531 = vmatprep.subr.mxu0 0.0
      %532 = vmatpush1.msra.mxu0 0.0
      %533 = vmatprep.subr.mxu0 0.0
      %534 = vmatpush1.msra.mxu0 0.0
      %535 = vmatprep.subr.mxu0 0.0
      %536 = vmatpush1.msra.mxu0 0.0
      %537 = vmatprep.subr.mxu0 0.0
      %538 = vmatpush1.msra.mxu0 0.0
      %539 = vmatprep.subr.mxu0 0.0
      %540 = vmatpush1.msra.mxu0 0.0
      %541 = vmatprep.subr.mxu0 0.0
      %542 = vmatpush1.msra.mxu0 0.0
      %543 = vmatprep.subr.mxu0 0.0
      %544 = vmatpush1.msra.mxu0 0.0
      %545 = vmatprep.subr.mxu0 0.0
      %546 = vmatpush1.msra.mxu0 0.0
      %547 = vmatprep.subr.mxu0 0.0
      %548 = vmatpush1.msra.mxu0 0.0
      %549 = vmatprep.subr.mxu0 0.0
      %550 = vmatpush1.msra.mxu0 0.0
      %551 = vmatprep.subr.mxu0 0.0
      %552 = vmatpush1.msra.mxu0 0.0
      %553 = vmatprep.subr.mxu0 0.0
      %554 = vmatpush1.msra.mxu0 0.0
      %555 = vmatprep.subr.mxu0 0.0
      %556 = vmatpush1.msra.mxu0 0.0
      %557 = vmatprep.subr.mxu0 0.0
      %558 = vmatpush1.msra.mxu0 0.0
      %559 = vmatprep.subr.mxu0 0.0
      %560 = vmatpush1.msra.mxu0 0.0
      %561 = vmatprep.subr.mxu0 0.0
      %562 = vmatpush1.msra.mxu0 0.0
      %563 = vmatprep.subr.mxu0 0.0
      %564 = vmatpush1.msra.mxu0 0.0
      %565 = vmatprep.subr.mxu0 0.0
      %566 = vmatpush1.msra.mxu0 0.0
      %567 = vmatprep.subr.mxu0 0.0
      %568 = vmatpush1.msra.mxu0 0.0
      %569 = vmatprep.subr.mxu0 0.0
      %570 = vmatpush1.msra.mxu0 0.0
      %571 = vmatprep.subr.mxu0 0.0
      %572 = vmatpush1.msra.mxu0 0.0
      %573 = vmatprep.subr.mxu0 0.0
      %574 = vmatpush1.msra.mxu0 0.0
      %575 = vmatprep.subr.mxu0 0.0
      %576 = vmatpush1.msra.mxu0 0.0
      %577 = vmatprep.subr.mxu0 0.0
      %578 = vmatpush1.msra.mxu0 0.0
      %579 = vmatprep.mubr.f32.mxu0 0.0
      %580 = vmatmul.mubr.f32.gmra.mrb[0].mxu0 %v492
      %v581 = vpop.f32.mrb[0].mxu0
      %v582 = vadd.f32 %v489, %v581
      %v583 = vpop.f32.mrb[0].mxu0
      %584 = vmatprep.mubr.f32.mxu0 0.0
      %585 = vmatmul.mubr.f32.gmra.mrb[0].mxu0 %v495
      %v586 = vpop.f32.mrb[0].mxu0
      %v587 = vadd.f32 %v489, %v586
      %v588 = vpop.f32.mrb[0].mxu0
      %589 = vmatprep.mubr.f32.mxu0 0.0
      %590 = vmatmul.mubr.f32.gmra.mrb[0].mxu0 %v498
      %v591 = vpop.f32.mrb[0].mxu0
      %v592 = vadd.f32 %v489, %v591
      %v593 = vpop.f32.mrb[0].mxu0
      %594 = vmatprep.mubr.f32.mxu0 0.0
      %595 = vmatmul.mubr.f32.gmra.mrb[0].mxu0 %v501
      %v596 = vpop.f32.mrb[0].mxu0
      %v597 = vadd.f32 %v489, %v596
      %v598 = vpop.f32.mrb[0].mxu0
      %599 = vmatprep.mubr.f32.mxu0 0.0
      %600 = vmatmul.mubr.f32.gmra.mrb[0].mxu0 %v504
      %v601 = vpop.f32.mrb[0].mxu0
      %v602 = vadd.f32 %v489, %v601
      %v603 = vpop.f32.mrb[0].mxu0
      %604 = vmatprep.mubr.f32.mxu0 0.0
      %605 = vmatmul.mubr.f32.gmra.mrb[0].mxu0 %v507
      %v606 = vpop.f32.mrb[0].mxu0
      %v607 = vadd.f32 %v489, %v606
      %v608 = vpop.f32.mrb[0].mxu0
      %609 = vmatprep.mubr.f32.mxu0 0.0
      %610 = vmatmul.mubr.f32.gmra.mrb[0].mxu0 %v510
      %v611 = vpop.f32.mrb[0].mxu0
      %v612 = vadd.f32 %v489, %v611
      %v613 = vpop.f32.mrb[0].mxu0
      %614 = vmatprep.mubr.f32.mxu0 0.0
      %615 = vmatmul.mubr.f32.gmra.mrb[0].mxu0 %v513
      %v616 = vpop.f32.mrb[0].mxu0
      %v617 = vadd.f32 %v489, %v616
      %v618 = vpop.f32.mrb[0].mxu0
      %619 = vdwg.mxu0
      %v620 = vmul.f32 %v582, %v582
      %v621 = vmul.f32 %v587, %v587
      %v622 = vmul.f32 %v592, %v592
      %v623 = vmul.f32 %v597, %v597
      %v624 = vmul.f32 %v602, %v602
      %v625 = vmul.f32 %v607, %v607
      %v626 = vmul.f32 %v612, %v612
      %v627 = vmul.f32 %v617, %v617
      %v628 = vmul.f32 %v582, %v620
      %v629 = vmul.f32 %v587, %v621
      %v630 = vmul.f32 %v592, %v622
      %v631 = vmul.f32 %v597, %v623
      %v632 = vmul.f32 %v602, %v624
      %v633 = vmul.f32 %v607, %v625
      %v634 = vmul.f32 %v612, %v626
      %v635 = vmul.f32 %v617, %v627
      %v636 = vmul.f32 %v628, 0.044715
      %v637 = vmul.f32 %v629, 0.044715
      %v638 = vmul.f32 %v630, 0.044715
      %v639 = vmul.f32 %v631, 0.044715
      %v640 = vmul.f32 %v632, 0.044715
      %v641 = vmul.f32 %v633, 0.044715
      %v642 = vmul.f32 %v634, 0.044715
      %v643 = vmul.f32 %v635, 0.044715
      %v644 = vadd.f32 %v582, %v636
      %v645 = vadd.f32 %v587, %v637
      %v646 = vadd.f32 %v592, %v638
      %v647 = vadd.f32 %v597, %v639
      %v648 = vadd.f32 %v602, %v640
      %v649 = vadd.f32 %v607, %v641
      %v650 = vadd.f32 %v612, %v642
      %v651 = vadd.f32 %v617, %v643
      %v652 = vmul.f32 %v644, 0.7978846
      %v653 = vmul.f32 %v645, 0.7978846
      %v654 = vmul.f32 %v646, 0.7978846
      %v655 = vmul.f32 %v647, 0.7978846
      %v656 = vmul.f32 %v648, 0.7978846
      %v657 = vmul.f32 %v649, 0.7978846
      %v658 = vmul.f32 %v650, 0.7978846
      %v659 = vmul.f32 %v651, 0.7978846
      %v660 = vtanh.pop %v652
      %v661 = vtanh.pop %v653
      %v662 = vtanh.pop %v654
      %v663 = vtanh.pop %v655
      %v664 = vtanh.pop %v656
      %v665 = vtanh.pop %v657
      %v666 = vtanh.pop %v658
      %v667 = vtanh.pop %v659
      %v668 = vadd.f32 %v660, 1.0
      %v669 = vadd.f32 %v661, 1.0
      %v670 = vadd.f32 %v662, 1.0
      %v671 = vadd.f32 %v663, 1.0
      %v672 = vadd.f32 %v664, 1.0
      %v673 = vadd.f32 %v665, 1.0
      %v674 = vadd.f32 %v666, 1.0
      %v675 = vadd.f32 %v667, 1.0
      %v676 = vmul.f32 %v668, 0.5
      %v677 = vmul.f32 %v669, 0.5
      %v678 = vmul.f32 %v670, 0.5
      %v679 = vmul.f32 %v671, 0.5
      %v680 = vmul.f32 %v672, 0.5
      %v681 = vmul.f32 %v673, 0.5
      %v682 = vmul.f32 %v674, 0.5
      %v683 = vmul.f32 %v675, 0.5
      %v684 = vmul.f32 %v582, %v676
      %v685 = vmul.f32 %v587, %v677
      %v686 = vmul.f32 %v592, %v678
      %v687 = vmul.f32 %v597, %v679
      %v688 = vmul.f32 %v602, %v680
      %v689 = vmul.f32 %v607, %v681
      %v690 = vmul.f32 %v612, %v682
      %v691 = vmul.f32 %v617, %v683
      %v692 = vld [vmem:[%s5] sm:$0xff]
      %v693 = vld [vmem:[%s5 + $0x8] sm:$0xff]
      %v694 = vld [vmem:[%s5 + $0x10] sm:$0xff]
      %v695 = vld [vmem:[%s5 + $0x18] sm:$0xff]
      %v696 = vld [vmem:[%s5 + $0x20] sm:$0xff]
      %v697 = vld [vmem:[%s5 + $0x28] sm:$0xff]
      %v698 = vld [vmem:[%s5 + $0x30] sm:$0xff]
      %v699 = vld [vmem:[%s5 + $0x38] sm:$0xff]
      %v700 = vld [vmem:[%s5 + $0x40] sm:$0xff]
      %v701 = vld [vmem:[%s5 + $0x48] sm:$0xff]
      %v702 = vld [vmem:[%s5 + $0x50] sm:$0xff]
      %v703 = vld [vmem:[%s5 + $0x58] sm:$0xff]
      %v704 = vld [vmem:[%s5 + $0x60] sm:$0xff]
      %v705 = vld [vmem:[%s5 + $0x68] sm:$0xff]
      %v706 = vld [vmem:[%s5 + $0x70] sm:$0xff]
      %v707 = vld [vmem:[%s5 + $0x78] sm:$0xff]
      %v708 = vld [vmem:[%s6] sm:$0x1]
      %v710 = vlaneseq
      %v711 = vshrl.u32 %v710, 7
      %v712 = vsub.s32 0, %v711
      %v713 = vrot.slane %v708, %v712
      %715 = vmatprep.subr.mxu0 0.0
      %716 = vmatpush1.msra.mxu0 %v692
      %717 = vmatprep.subr.mxu0 0.0
      %718 = vmatpush1.msra.mxu0 %v693
      %719 = vmatprep.subr.mxu0 0.0
      %720 = vmatpush1.msra.mxu0 %v694
      %721 = vmatprep.subr.mxu0 0.0
      %722 = vmatpush1.msra.mxu0 %v695
      %723 = vmatprep.subr.mxu0 0.0
      %724 = vmatpush1.msra.mxu0 %v696
      %725 = vmatprep.subr.mxu0 0.0
      %726 = vmatpush1.msra.mxu0 %v697
      %727 = vmatprep.subr.mxu0 0.0
      %728 = vmatpush1.msra.mxu0 %v698
      %729 = vmatprep.subr.mxu0 0.0
      %730 = vmatpush1.msra.mxu0 %v699
      %731 = vmatprep.subr.mxu0 0.0
      %732 = vmatpush1.msra.mxu0 %v700
      %733 = vmatprep.subr.mxu0 0.0
      %734 = vmatpush1.msra.mxu0 %v701
      %735 = vmatprep.subr.mxu0 0.0
      %736 = vmatpush1.msra.mxu0 %v702
      %737 = vmatprep.subr.mxu0 0.0
      %738 = vmatpush1.msra.mxu0 %v703
      %739 = vmatprep.subr.mxu0 0.0
      %740 = vmatpush1.msra.mxu0 %v704
      %741 = vmatprep.subr.mxu0 0.0
      %742 = vmatpush1.msra.mxu0 %v705
      %743 = vmatprep.subr.mxu0 0.0
      %744 = vmatpush1.msra.mxu0 %v706
      %745 = vmatprep.subr.mxu0 0.0
      %746 = vmatpush1.msra.mxu0 %v707
      %747 = vmatprep.subr.mxu0 0.0
      %748 = vmatpush1.msra.mxu0 0.0
      %749 = vmatprep.subr.mxu0 0.0
      %750 = vmatpush1.msra.mxu0 0.0
      %751 = vmatprep.subr.mxu0 0.0
      %752 = vmatpush1.msra.mxu0 0.0
      %753 = vmatprep.subr.mxu0 0.0
      %754 = vmatpush1.msra.mxu0 0.0
      %755 = vmatprep.subr.mxu0 0.0
      %756 = vmatpush1.msra.mxu0 0.0
      %757 = vmatprep.subr.mxu0 0.0
      %758 = vmatpush1.msra.mxu0 0.0
      %759 = vmatprep.subr.mxu0 0.0
      %760 = vmatpush1.msra.mxu0 0.0
      %761 = vmatprep.subr.mxu0 0.0
      %762 = vmatpush1.msra.mxu0 0.0
      %763 = vmatprep.subr.mxu0 0.0
      %764 = vmatpush1.msra.mxu0 0.0
      %765 = vmatprep.subr.mxu0 0.0
      %766 = vmatpush1.msra.mxu0 0.0
      %767 = vmatprep.subr.mxu0 0.0
      %768 = vmatpush1.msra.mxu0 0.0
      %769 = vmatprep.subr.mxu0 0.0
      %770 = vmatpush1.msra.mxu0 0.0
      %771 = vmatprep.subr.mxu0 0.0
      %772 = vmatpush1.msra.mxu0 0.0
      %773 = vmatprep.subr.mxu0 0.0
      %774 = vmatpush1.msra.mxu0 0.0
      %775 = vmatprep.subr.mxu0 0.0
      %776 = vmatpush1.msra.mxu0 0.0
      %777 = vmatprep.subr.mxu0 0.0
      %778 = vmatpush1.msra.mxu0 0.0
      %779 = vmatprep.mubr.f32.mxu0 0.0
      %780 = vmatmul.mubr.f32.gmra.mrb[0].mxu0 %v684
      %v781 = vpop.f32.mrb[0].mxu0
      %v782 = vadd.f32 %v713, %v781
      %v783 = vpop.f32.mrb[0].mxu0
      %784 = vmatprep.mubr.f32.mxu0 0.0
      %785 = vmatmul.mubr.f32.gmra.mrb[0].mxu0 %v685
      %v786 = vpop.f32.mrb[0].mxu0
      %v787 = vadd.f32 %v713, %v786
      %v788 = vpop.f32.mrb[0].mxu0
      %789 = vmatprep.mubr.f32.mxu0 0.0
      %790 = vmatmul.mubr.f32.gmra.mrb[0].mxu0 %v686
      %v791 = vpop.f32.mrb[0].mxu0
      %v792 = vadd.f32 %v713, %v791
      %v793 = vpop.f32.mrb[0].mxu0
      %794 = vmatprep.mubr.f32.mxu0 0.0
      %795 = vmatmul.mubr.f32.gmra.mrb[0].mxu0 %v687
      %v796 = vpop.f32.mrb[0].mxu0
      %v797 = vadd.f32 %v713, %v796
      %v798 = vpop.f32.mrb[0].mxu0
      %799 = vmatprep.mubr.f32.mxu0 0.0
      %800 = vmatmul.mubr.f32.gmra.mrb[0].mxu0 %v688
      %v801 = vpop.f32.mrb[0].mxu0
      %v802 = vadd.f32 %v713, %v801
      %v803 = vpop.f32.mrb[0].mxu0
      %804 = vmatprep.mubr.f32.mxu0 0.0
      %805 = vmatmul.mubr.f32.gmra.mrb[0].mxu0 %v689
      %v806 = vpop.f32.mrb[0].mxu0
      %v807 = vadd.f32 %v713, %v806
      %v808 = vpop.f32.mrb[0].mxu0
      %809 = vmatprep.mubr.f32.mxu0 0.0
      %810 = vmatmul.mubr.f32.gmra.mrb[0].mxu0 %v690
      %v811 = vpop.f32.mrb[0].mxu0
      %v812 = vadd.f32 %v713, %v811
      %v813 = vpop.f32.mrb[0].mxu0
      %814 = vmatprep.mubr.f32.mxu0 0.0
      %815 = vmatmul.mubr.f32.gmra.mrb[0].mxu0 %v691
      %v816 = vpop.f32.mrb[0].mxu0
      %v817 = vadd.f32 %v713, %v816
      %v818 = vpop.f32.mrb[0].mxu0
      %819 = vdwg.mxu0
      %v820 = vadd.f32 %v472, %v782
      %v821 = vadd.f32 %v473, %v787
      %v822 = vadd.f32 %v474, %v792
      %v823 = vadd.f32 %v475, %v797
      %v824 = vadd.f32 %v476, %v802
      %v825 = vadd.f32 %v477, %v807
      %v826 = vadd.f32 %v478, %v812
      %v827 = vadd.f32 %v479, %v817
      %v828 = vsel %vm344, %v820, 0.0
      %829 = vadd.xlane.f32.xlu0 %v828
      %v830 = vpop.xlane.xlu0 %829
      %v831 = vsel %vm344, %v821, 0.0
      %832 = vadd.xlane.f32.xlu0 %v831
      %v833 = vpop.xlane.xlu0 %832
      %v834 = vsel %vm344, %v822, 0.0
      %835 = vadd.xlane.f32.xlu0 %v834
      %v836 = vpop.xlane.xlu0 %835
      %v837 = vsel %vm344, %v823, 0.0
      %838 = vadd.xlane.f32.xlu0 %v837
      %v839 = vpop.xlane.xlu0 %838
      %v840 = vsel %vm344, %v824, 0.0
      %841 = vadd.xlane.f32.xlu0 %v840
      %v842 = vpop.xlane.xlu0 %841
      %v843 = vsel %vm344, %v825, 0.0
      %844 = vadd.xlane.f32.xlu0 %v843
      %v845 = vpop.xlane.xlu0 %844
      %v846 = vsel %vm344, %v826, 0.0
      %847 = vadd.xlane.f32.xlu0 %v846
      %v848 = vpop.xlane.xlu0 %847
      %v849 = vsel %vm344, %v827, 0.0
      %850 = vadd.xlane.f32.xlu0 %v849
      %v851 = vpop.xlane.xlu0 %850
      %v852 = vmul.f32 %v830, %v369
      %v853 = vmul.f32 %v833, %v369
      %v854 = vmul.f32 %v836, %v369
      %v855 = vmul.f32 %v839, %v369
      %v856 = vmul.f32 %v842, %v369
      %v857 = vmul.f32 %v845, %v369
      %v858 = vmul.f32 %v848, %v369
      %v859 = vmul.f32 %v851, %v369
      %v860 = vsub.f32 %v820, %v852
      %v861 = vsub.f32 %v821, %v853
      %v862 = vsub.f32 %v822, %v854
      %v863 = vsub.f32 %v823, %v855
      %v864 = vsub.f32 %v824, %v856
      %v865 = vsub.f32 %v825, %v857
      %v866 = vsub.f32 %v826, %v858
      %v867 = vsub.f32 %v827, %v859
      %v868 = vmul.f32 %v860, %v860
      %v869 = vmul.f32 %v861, %v861
      %v870 = vmul.f32 %v862, %v862
      %v871 = vmul.f32 %v863, %v863
      %v872 = vmul.f32 %v864, %v864
      %v873 = vmul.f32 %v865, %v865
      %v874 = vmul.f32 %v866, %v866
      %v875 = vmul.f32 %v867, %v867
      %v876 = vsel %vm344, %v868, 0.0
      %877 = vadd.xlane.f32.xlu0 %v876
      %v878 = vpop.xlane.xlu0 %877
      %v879 = vsel %vm344, %v869, 0.0
      %880 = vadd.xlane.f32.xlu0 %v879
      %v881 = vpop.xlane.xlu0 %880
      %v882 = vsel %vm344, %v870, 0.0
      %883 = vadd.xlane.f32.xlu0 %v882
      %v884 = vpop.xlane.xlu0 %883
      %v885 = vsel %vm344, %v871, 0.0
      %886 = vadd.xlane.f32.xlu0 %v885
      %v887 = vpop.xlane.xlu0 %886
      %v888 = vsel %vm344, %v872, 0.0
      %889 = vadd.xlane.f32.xlu0 %v888
      %v890 = vpop.xlane.xlu0 %889
      %v891 = vsel %vm344, %v873, 0.0
      %892 = vadd.xlane.f32.xlu0 %v891
      %v893 = vpop.xlane.xlu0 %892
      %v894 = vsel %vm344, %v874, 0.0
      %895 = vadd.xlane.f32.xlu0 %v894
      %v896 = vpop.xlane.xlu0 %895
      %v897 = vsel %vm344, %v875, 0.0
      %898 = vadd.xlane.f32.xlu0 %v897
      %v899 = vpop.xlane.xlu0 %898
      %v900 = vmul.f32 %v878, %v369
      %v901 = vmul.f32 %v881, %v369
      %v902 = vmul.f32 %v884, %v369
      %v903 = vmul.f32 %v887, %v369
      %v904 = vmul.f32 %v890, %v369
      %v905 = vmul.f32 %v893, %v369
      %v906 = vmul.f32 %v896, %v369
      %v907 = vmul.f32 %v899, %v369
      %v908 = vadd.f32 %v900, 1e-05
      %v909 = vadd.f32 %v901, 1e-05
      %v910 = vadd.f32 %v902, 1e-05
      %v911 = vadd.f32 %v903, 1e-05
      %v912 = vadd.f32 %v904, 1e-05
      %v913 = vadd.f32 %v905, 1e-05
      %v914 = vadd.f32 %v906, 1e-05
      %v915 = vadd.f32 %v907, 1e-05
      %v916 = vrsqrt.pop %v908
      %v917 = vrsqrt.pop %v909
      %v918 = vrsqrt.pop %v910
      %v919 = vrsqrt.pop %v911
      %v920 = vrsqrt.pop %v912
      %v921 = vrsqrt.pop %v913
      %v922 = vrsqrt.pop %v914
      %v923 = vrsqrt.pop %v915
      %v924 = vmul.f32 %v860, %v916
      %v925 = vmul.f32 %v861, %v917
      %v926 = vmul.f32 %v862, %v918
      %v927 = vmul.f32 %v863, %v919
      %v928 = vmul.f32 %v864, %v920
      %v929 = vmul.f32 %v865, %v921
      %v930 = vmul.f32 %v866, %v922
      %v931 = vmul.f32 %v867, %v923
      %v932 = vld [vmem:[%s7] sm:$0x1]
      %v934 = vlaneseq
      %v935 = vshrl.u32 %v934, 7
      %v936 = vsub.s32 0, %v935
      %v937 = vrot.slane %v932, %v936
      %v939 = vmul.f32 %v924, %v937
      %v940 = vmul.f32 %v925, %v937
      %v941 = vmul.f32 %v926, %v937
      %v942 = vmul.f32 %v927, %v937
      %v943 = vmul.f32 %v928, %v937
      %v944 = vmul.f32 %v929, %v937
      %v945 = vmul.f32 %v930, %v937
      %v946 = vmul.f32 %v931, %v937
      %v947 = vld [vmem:[%s8] sm:$0x1]
      %v949 = vlaneseq
      %v950 = vshrl.u32 %v949, 7
      %v951 = vsub.s32 0, %v950
      %v952 = vrot.slane %v947, %v951
      %v954 = vadd.f32 %v939, %v952
      %v955 = vadd.f32 %v940, %v952
      %v956 = vadd.f32 %v941, %v952
      %v957 = vadd.f32 %v942, %v952
      %v958 = vadd.f32 %v943, %v952
      %v959 = vadd.f32 %v944, %v952
      %v960 = vadd.f32 %v945, %v952
      %v961 = vadd.f32 %v946, %v952
      %962 = vst.msk [vmem:[%s334] sm:$0xff] %vm344, %v954
      %963 = vst.msk [vmem:[%s334 + $0x8] sm:$0xff] %vm344, %v955
      %964 = vst.msk [vmem:[%s334 + $0x10] sm:$0xff] %vm344, %v956
      %965 = vst.msk [vmem:[%s334 + $0x18] sm:$0xff] %vm344, %v957
      %966 = vst.msk [vmem:[%s334 + $0x20] sm:$0xff] %vm344, %v958
      %967 = vst.msk [vmem:[%s334 + $0x28] sm:$0xff] %vm344, %v959
      %968 = vst.msk [vmem:[%s334 + $0x30] sm:$0xff] %vm344, %v960
      %969 = vst.msk [vmem:[%s334 + $0x38] sm:$0xff] %vm344, %v961
      %s970 = smul.u32 8, %s20
      %p971 = scmp.lt.s32.totalorder %s970, 63
      %s972 = scalar_select %p971, %s970, 63
      %s973 = smul.addr %s972, 8
      %s974 = scalar_lea.vmem %s9, %s973
      // Predicated region
      $region57: #{fused_ln_mlp_ln.1} parent=55 // pred_check
        %p975 = pneg %p232
      $region58: #{fused_ln_mlp_ln.1} parent=55 // pred_check_branch
        %977 = sbr.rel (%p975) target = $region60
      $region59: #{fused_ln_mlp_ln.1} parent=55 // pred_region
        %s978 = smul.u32 8, %s20
      $region60: #{fused_ln_mlp_ln.1} parent=55 // pred_fallthru
        _
    $region56: #{fused_ln_mlp_ln.1} parent=5 // pred_fallthru
      _
    %p979 = scmp.le.s32.totalorder 2, %s15
    // Predicated region
    $region61: #{fused_ln_mlp_ln.1} parent=5 // pred_check
      %p980 = pneg %p979
    $region62: #{fused_ln_mlp_ln.1} parent=5 // pred_check_branch
      %982 = sbr.rel (%p980) target = $region64
    $region63: #{fused_ln_mlp_ln.1} parent=5 // pred_region
      %s983 = ssub.s32 %s15, 2
      // Predicated region
      $region65: #{fused_ln_mlp_ln.1} parent=63 // pred_check
        %p984 = pneg %p238
      $region66: #{fused_ln_mlp_ln.1} parent=63 // pred_check_branch
        %986 = sbr.rel (%p984) target = $region68
      $region67: #{fused_ln_mlp_ln.1} parent=63 // pred_region
        %s987 = smul.u32 8, %s21
        %p988 = scmp.lt.s32.totalorder %s987, 63
        %s989 = scalar_select %p988, %s987, 63
        %s990 = smul.addr %s989, 8
        %s991 = scalar_lea.vmem %s9, %s990
      $region68: #{fused_ln_mlp_ln.1} parent=63 // pred_fallthru
        _
    $region64: #{fused_ln_mlp_ln.1} parent=5 // pred_fallthru
      _
  $region6: #{fused_ln_mlp_ln.1} parent=0 // loop_footer
    %s19 = sadd.s32 1, %s15
  $region7: #{fused_ln_mlp_ln.1} parent=0 // loop_footer_branch
    %14 = sbr.rel target = $region3
  $region8: #{fused_ln_mlp_ln.1} parent=0 // loop_exit
    _

// kernel: fused_ln_mlp_ln.1
$region0: #{fused_ln_mlp_ln.1}
  #allocation0 [shape = 'u32[]', space=smem, size = 0x4, offset = 0x4, fixed_abs, tag = 'smem constant byte address 0x4 - core index']
  #allocation1 [shape = 'u32[144,128]{1,0:T(1,128)}', space=vmem, size = 0x12000, scoped, tag = 'internal scratch']
  %s0 = inlined_call_operand.vmem [shape: f32[512,32], index: 0, kind: input, shape index: {}]
  %s1 = inlined_call_operand.vmem [shape: f32[1,32], index: 1, kind: input, shape index: {}]
  %s2 = inlined_call_operand.vmem [shape: f32[1,32], index: 2, kind: input, shape index: {}]
  %s3 = inlined_call_operand.vmem [shape: f32[32,128], index: 3, kind: input, shape index: {}]
  %s4 = inlined_call_operand.vmem [shape: f32[1,128], index: 4, kind: input, shape index: {}]
  %s5 = inlined_call_operand.vmem [shape: f32[128,32], index: 5, kind: input, shape index: {}]
  %s6 = inlined_call_operand.vmem [shape: f32[1,32], index: 6, kind: input, shape index: {}]
  %s7 = inlined_call_operand.vmem [shape: f32[1,32], index: 7, kind: input, shape index: {}]
  %s8 = inlined_call_operand.vmem [shape: f32[1,32], index: 8, kind: input, shape index: {}]
  %s9 = inlined_call_operand.vmem [shape: f32[512,32], index: 9, kind: output, shape index: {}]
  %s10 = sld [smem:[#allocation0]]
  $region69: #{fused_ln_mlp_ln.1} parent=0
    _
  %s12 = ssub.s32 1, %s10
  %s13 = scalar_select 0, %s12, %s10
  loop: start=0, step=1, limit=10
  $region2: #{fused_ln_mlp_ln.1} parent=0 // loop_pre_header
    _
  $region3: #{fused_ln_mlp_ln.1} parent=0 // loop_header
    %s15 = sphi 0, %s19
    %p16 = scmp.ge.s32.totalorder %s15, 10
    %s25 = sphi 0, %s27
    %s28 = sphi 0, %s25
    %s29 = sphi 0, %s28
    %s45 = sphi 0, %s29
    %s49 = sphi 0, %s49
    %s51 = sphi 0, %s49
    %s52 = sphi 0, %s51
    %s66 = sphi 0, %s52
    %s70 = sphi 0, %s70
    %s72 = sphi 0, %s70
    %s73 = sphi 0, %s72
    %s87 = sphi 0, %s73
    %s91 = sphi 0, %s91
    %s93 = sphi 0, %s91
    %s94 = sphi 0, %s93
    %s108 = sphi 0, %s94
    %s112 = sphi 0, %s112
    %s114 = sphi 0, %s112
    %s115 = sphi 0, %s114
    %s129 = sphi 0, %s115
    %s133 = sphi 0, %s133
    %s135 = sphi 0, %s133
    %s136 = sphi 0, %s135
    %s150 = sphi 0, %s136
    %s154 = sphi 0, %s154
    %s156 = sphi 0, %s154
    %s157 = sphi 0, %s156
    %s171 = sphi 0, %s157
    %s175 = sphi 0, %s175
    %s177 = sphi 0, %s175
    %s178 = sphi 0, %s177
    %s192 = sphi 0, %s178
    %s196 = sphi 0, %s196
    %s198 = sphi 0, %s196
    %s199 = sphi 0, %s198
    %s213 = sphi 0, %s199
    %s219 = sphi 0, %s221
    %s222 = sphi 0, %s219
    %s223 = sphi 0, %s222
    %s239 = sphi 0, %s223
  $region4: #{fused_ln_mlp_ln.1} parent=0 // loop_header_branch
    %18 = sbr.rel (%p16) target = $region8
  $region5: #{fused_ln_mlp_ln.1} parent=0 // loop_body
    %s20 = ssub.s32 %s15, 1
    %s21 = ssub.s32 %s15, 2
    %s22 = sadd.s32 %s15, 1
    %s23 = ssub.s32 %s15, %s22
    %p24 = scmp.eq.s32.totalorder %s23, 0
    %s26 = sadd.s32 %s25, 1
    %s27 = scalar_select %p24, %s25, %s26
    %p30 = pneg %p24
    %p31 = scmp.eq.s32.totalorder %s15, 7
    %p32 = por %p30, %p31
    %p33 = scmp.ne.s32.totalorder %s25, %s28
    %p34 = scmp.eq.s32.totalorder %s15, 0
    %p35 = por %p33, %p34
    %p36 = scmp.ne.s32.totalorder %s25, %s28
    %p37 = scmp.eq.s32.totalorder %s20, 7
    %p38 = por %p36, %p37
    %p39 = scmp.ne.s32.totalorder %s28, %s29
    %p40 = scmp.eq.s32.totalorder %s20, 0
    %p41 = por %p39, %p40
    %p42 = scmp.ne.s32.totalorder %s28, %s29
    %p43 = scmp.eq.s32.totalorder %s21, 7
    %p44 = por %p42, %p43
    %p46 = scmp.ne.s32.totalorder %s29, %s45
    %p47 = scmp.eq.s32.totalorder %s21, 0
    %p48 = por %p46, %p47
    %s50 = sadd.s32 %s49, 1
    %p53 = scmp.eq.s32.totalorder %s15, 7
    %p54 = scmp.ne.s32.totalorder %s49, %s51
    %p55 = scmp.eq.s32.totalorder %s15, 0
    %p56 = por %p54, %p55
    %p57 = scmp.ne.s32.totalorder %s49, %s51
    %p58 = scmp.eq.s32.totalorder %s20, 7
    %p59 = por %p57, %p58
    %p60 = scmp.ne.s32.totalorder %s51, %s52
    %p61 = scmp.eq.s32.totalorder %s20, 0
    %p62 = por %p60, %p61
    %p63 = scmp.ne.s32.totalorder %s51, %s52
    %p64 = scmp.eq.s32.totalorder %s21, 7
    %p65 = por %p63, %p64
    %p67 = scmp.ne.s32.totalorder %s52, %s66
    %p68 = scmp.eq.s32.totalorder %s21, 0
    %p69 = por %p67, %p68
    %s71 = sadd.s32 %s70, 1
    %p74 = scmp.eq.s32.totalorder %s15, 7
    %p75 = scmp.ne.s32.totalorder %s70, %s72
    %p76 = scmp.eq.s32.totalorder %s15, 0
    %p77 = por %p75, %p76
    %p78 = scmp.ne.s32.totalorder %s70, %s72
    %p79 = scmp.eq.s32.totalorder %s20, 7
    %p80 = por %p78, %p79
    %p81 = scmp.ne.s32.totalorder %s72, %s73
    %p82 = scmp.eq.s32.totalorder %s20, 0
    %p83 = por %p81, %p82
    %p84 = scmp.ne.s32.totalorder %s72, %s73
    %p85 = scmp.eq.s32.totalorder %s21, 7
    %p86 = por %p84, %p85
    %p88 = scmp.ne.s32.totalorder %s73, %s87
    %p89 = scmp.eq.s32.totalorder %s21, 0
    %p90 = por %p88, %p89
    %s92 = sadd.s32 %s91, 1
    %p95 = scmp.eq.s32.totalorder %s15, 7
    %p96 = scmp.ne.s32.totalorder %s91, %s93
    %p97 = scmp.eq.s32.totalorder %s15, 0
    %p98 = por %p96, %p97
    %p99 = scmp.ne.s32.totalorder %s91, %s93
    %p100 = scmp.eq.s32.totalorder %s20, 7
    %p101 = por %p99, %p100
    %p102 = scmp.ne.s32.totalorder %s93, %s94
    %p103 = scmp.eq.s32.totalorder %s20, 0
    %p104 = por %p102, %p103
    %p105 = scmp.ne.s32.totalorder %s93, %s94
    %p106 = scmp.eq.s32.totalorder %s21, 7
    %p107 = por %p105, %p106
    %p109 = scmp.ne.s32.totalorder %s94, %s108
    %p110 = scmp.eq.s32.totalorder %s21, 0
    %p111 = por %p109, %p110
    %s113 = sadd.s32 %s112, 1
    %p116 = scmp.eq.s32.totalorder %s15, 7
    %p117 = scmp.ne.s32.totalorder %s112, %s114
    %p118 = scmp.eq.s32.totalorder %s15, 0
    %p119 = por %p117, %p118
    %p120 = scmp.ne.s32.totalorder %s112, %s114
    %p121 = scmp.eq.s32.totalorder %s20, 7
    %p122 = por %p120, %p121
    %p123 = scmp.ne.s32.totalorder %s114, %s115
    %p124 = scmp.eq.s32.totalorder %s20, 0
    %p125 = por %p123, %p124
    %p126 = scmp.ne.s32.totalorder %s114, %s115
    %p127 = scmp.eq.s32.totalorder %s21, 7
    %p128 = por %p126, %p127
    %p130 = scmp.ne.s32.totalorder %s115, %s129
    %p131 = scmp.eq.s32.totalorder %s21, 0
    %p132 = por %p130, %p131
    %s134 = sadd.s32 %s133, 1
    %p137 = scmp.eq.s32.totalorder %s15, 7
    %p138 = scmp.ne.s32.totalorder %s133, %s135
    %p139 = scmp.eq.s32.totalorder %s15, 0
    %p140 = por %p138, %p139
    %p141 = scmp.ne.s32.totalorder %s133, %s135
    %p142 = scmp.eq.s32.totalorder %s20, 7
    %p143 = por %p141, %p142
    %p144 = scmp.ne.s32.totalorder %s135, %s136
    %p145 = scmp.eq.s32.totalorder %s20, 0
    %p146 = por %p144, %p145
    %p147 = scmp.ne.s32.totalorder %s135, %s136
    %p148 = scmp.eq.s32.totalorder %s21, 7
    %p149 = por %p147, %p148
    %p151 = scmp.ne.s32.totalorder %s136, %s150
    %p152 = scmp.eq.s32.totalorder %s21, 0
    %p153 = por %p151, %p152
    %s155 = sadd.s32 %s154, 1
    %p158 = scmp.eq.s32.totalorder %s15, 7
    %p159 = scmp.ne.s32.totalorder %s154, %s156
    %p160 = scmp.eq.s32.totalorder %s15, 0
    %p161 = por %p159, %p160
    %p162 = scmp.ne.s32.totalorder %s154, %s156
    %p163 = scmp.eq.s32.totalorder %s20, 7
    %p164 = por %p162, %p163
    %p165 = scmp.ne.s32.totalorder %s156, %s157
    %p166 = scmp.eq.s32.totalorder %s20, 0
    %p167 = por %p165, %p166
    %p168 = scmp.ne.s32.totalorder %s156, %s157
    %p169 = scmp.eq.s32.totalorder %s21, 7
    %p170 = por %p168, %p169
    %p172 = scmp.ne.s32.totalorder %s157, %s171
    %p173 = scmp.eq.s32.totalorder %s21, 0
    %p174 = por %p172, %p173
    %s176 = sadd.s32 %s175, 1
    %p179 = scmp.eq.s32.totalorder %s15, 7
    %p180 = scmp.ne.s32.totalorder %s175, %s177
    %p181 = scmp.eq.s32.totalorder %s15, 0
    %p182 = por %p180, %p181
    %p183 = scmp.ne.s32.totalorder %s175, %s177
    %p184 = scmp.eq.s32.totalorder %s20, 7
    %p185 = por %p183, %p184
    %p186 = scmp.ne.s32.totalorder %s177, %s178
    %p187 = scmp.eq.s32.totalorder %s20, 0
    %p188 = por %p186, %p187
    %p189 = scmp.ne.s32.totalorder %s177, %s178
    %p190 = scmp.eq.s32.totalorder %s21, 7
    %p191 = por %p189, %p190
    %p193 = scmp.ne.s32.totalorder %s178, %s192
    %p194 = scmp.eq.s32.totalorder %s21, 0
    %p195 = por %p193, %p194
    %s197 = sadd.s32 %s196, 1
    %p200 = scmp.eq.s32.totalorder %s15, 7
    %p201 = scmp.ne.s32.totalorder %s196, %s198
    %p202 = scmp.eq.s32.totalorder %s15, 0
    %p203 = por %p201, %p202
    %p204 = scmp.ne.s32.totalorder %s196, %s198
    %p205 = scmp.eq.s32.totalorder %s20, 7
    %p206 = por %p204, %p205
    %p207 = scmp.ne.s32.totalorder %s198, %s199
    %p208 = scmp.eq.s32.totalorder %s20, 0
    %p209 = por %p207, %p208
    %p210 = scmp.ne.s32.totalorder %s198, %s199
    %p211 = scmp.eq.s32.totalorder %s21, 7
    %p212 = por %p210, %p211
    %p214 = scmp.ne.s32.totalorder %s199, %s213
    %p215 = scmp.eq.s32.totalorder %s21, 0
    %p216 = por %p214, %p215
    %s217 = ssub.s32 %s15, %s22
    %p218 = scmp.eq.s32.totalorder %s217, 0
    %s220 = sadd.s32 %s219, 1
    %s221 = scalar_select %p218, %s219, %s220
    %p224 = pneg %p218
    %p225 = scmp.eq.s32.totalorder %s15, 7
    %p226 = por %p224, %p225
    %p227 = scmp.ne.s32.totalorder %s219, %s222
    %p228 = scmp.eq.s32.totalorder %s15, 0
    %p229 = por %p227, %p228
    %p230 = scmp.ne.s32.totalorder %s219, %s222
    %p231 = scmp.eq.s32.totalorder %s20, 7
    %p232 = por %p230, %p231
    %p233 = scmp.ne.s32.totalorder %s222, %s223
    %p234 = scmp.eq.s32.totalorder %s20, 0
    %p235 = por %p233, %p234
    %p236 = scmp.ne.s32.totalorder %s222, %s223
    %p237 = scmp.eq.s32.totalorder %s21, 7
    %p238 = por %p236, %p237
    %p240 = scmp.ne.s32.totalorder %s223, %s239
    %p241 = scmp.eq.s32.totalorder %s21, 0
    %p242 = por %p240, %p241
    %p243 = scmp.le.s32.totalorder 1, %s15
    %p244 = scmp.lt.s32.totalorder %s15, 9
    %p245 = pnand %p243, %p244
    %p246 = pneg %p245
    // Predicated region
    $region9: #{fused_ln_mlp_ln.1} parent=5 // pred_check
      _
    $region10: #{fused_ln_mlp_ln.1} parent=5 // pred_check_branch
      %248 = sbr.rel (%p245) target = $region12
    $region11: #{fused_ln_mlp_ln.1} parent=5 // pred_region
      %s249 = ssub.s32 %s15, 1
      // Predicated region
      $region13: #{fused_ln_mlp_ln.1} parent=11 // pred_check
        %p250 = pneg %p62
      $region14: #{fused_ln_mlp_ln.1} parent=11 // pred_check_branch
        %252 = sbr.rel (%p250) target = $region16
      $region15: #{fused_ln_mlp_ln.1} parent=11 // pred_region
        _
      $region16: #{fused_ln_mlp_ln.1} parent=11 // pred_fallthru
        _
      // Predicated region
      $region17: #{fused_ln_mlp_ln.1} parent=11 // pred_check
        %p253 = pneg %p83
      $region18: #{fused_ln_mlp_ln.1} parent=11 // pred_check_branch
        %255 = sbr.rel (%p253) target = $region20
      $region19: #{fused_ln_mlp_ln.1} parent=11 // pred_region
        _
      $region20: #{fused_ln_mlp_ln.1} parent=11 // pred_fallthru
        _
      // Predicated region
      $region21: #{fused_ln_mlp_ln.1} parent=11 // pred_check
        %p256 = pneg %p104
      $region22: #{fused_ln_mlp_ln.1} parent=11 // pred_check_branch
        %258 = sbr.rel (%p256) target = $region24
      $region23: #{fused_ln_mlp_ln.1} parent=11 // pred_region
        _
      $region24: #{fused_ln_mlp_ln.1} parent=11 // pred_fallthru
        _
      // Predicated region
      $region25: #{fused_ln_mlp_ln.1} parent=11 // pred_check
        %p259 = pneg %p125
      $region26: #{fused_ln_mlp_ln.1} parent=11 // pred_check_branch
        %261 = sbr.rel (%p259) target = $region28
      $region27: #{fused_ln_mlp_ln.1} parent=11 // pred_region
        _
      $region28: #{fused_ln_mlp_ln.1} parent=11 // pred_fallthru
        _
      // Predicated region
      $region29: #{fused_ln_mlp_ln.1} parent=11 // pred_check
        %p262 = pneg %p146
      $region30: #{fused_ln_mlp_ln.1} parent=11 // pred_check_branch
        %264 = sbr.rel (%p262) target = $region32
      $region31: #{fused_ln_mlp_ln.1} parent=11 // pred_region
        _
      $region32: #{fused_ln_mlp_ln.1} parent=11 // pred_fallthru
        _
      // Predicated region
      $region33: #{fused_ln_mlp_ln.1} parent=11 // pred_check
        %p265 = pneg %p167
      $region34: #{fused_ln_mlp_ln.1} parent=11 // pred_check_branch
        %267 = sbr.rel (%p265) target = $region36
      $region35: #{fused_ln_mlp_ln.1} parent=11 // pred_region
        _
      $region36: #{fused_ln_mlp_ln.1} parent=11 // pred_fallthru
        _
      // Predicated region
      $region37: #{fused_ln_mlp_ln.1} parent=11 // pred_check
        %p268 = pneg %p188
      $region38: #{fused_ln_mlp_ln.1} parent=11 // pred_check_branch
        %270 = sbr.rel (%p268) target = $region40
      $region39: #{fused_ln_mlp_ln.1} parent=11 // pred_region
        _
      $region40: #{fused_ln_mlp_ln.1} parent=11 // pred_fallthru
        _
      // Predicated region
      $region41: #{fused_ln_mlp_ln.1} parent=11 // pred_check
        %p271 = pneg %p209
      $region42: #{fused_ln_mlp_ln.1} parent=11 // pred_check_branch
        %273 = sbr.rel (%p271) target = $region44
      $region43: #{fused_ln_mlp_ln.1} parent=11 // pred_region
        _
      $region44: #{fused_ln_mlp_ln.1} parent=11 // pred_fallthru
        _
    $region12: #{fused_ln_mlp_ln.1} parent=5 // pred_fallthru
      _
    %p274 = scmp.lt.s32.totalorder %s15, 8
    // Predicated region
    $region45: #{fused_ln_mlp_ln.1} parent=5 // pred_check
      %p275 = pneg %p274
    $region46: #{fused_ln_mlp_ln.1} parent=5 // pred_check_branch
      %277 = sbr.rel (%p275) target = $region48
    $region47: #{fused_ln_mlp_ln.1} parent=5 // pred_region
      // Predicated region
      $region49: #{fused_ln_mlp_ln.1} parent=47 // pred_check
        %p278 = pneg %p35
      $region50: #{fused_ln_mlp_ln.1} parent=47 // pred_check_branch
        %280 = sbr.rel (%p278) target = $region52
      $region51: #{fused_ln_mlp_ln.1} parent=47 // pred_region
        %s281 = smul.u32 8, %s15
        %p282 = scmp.lt.s32.totalorder %s281, 63
        %s283 = scalar_select %p282, %s281, 63
        %s284 = smul.addr %s283, 8
        %s285 = scalar_lea.vmem %s0, %s284
        %s286 = smul.u32 8, %s15
      $region52: #{fused_ln_mlp_ln.1} parent=47 // pred_fallthru
        _
    $region48: #{fused_ln_mlp_ln.1} parent=5 // pred_fallthru
      _
    %p287 = scmp.le.s32.totalorder 1, %s15
    %p288 = scmp.lt.s32.totalorder %s15, 9
    %p289 = pnand %p287, %p288
    %p290 = pneg %p289
    // Predicated region
    $region53: #{fused_ln_mlp_ln.1} parent=5 // pred_check
      _
    $region54: #{fused_ln_mlp_ln.1} parent=5 // pred_check_branch
      %292 = sbr.rel (%p289) target = $region56
    $region55: #{fused_ln_mlp_ln.1} parent=5 // pred_region
      %s293 = ssub.s32 %s15, 1
      %s294 = smul.u32 8, %s20
      %p295 = scmp.lt.s32.totalorder %s294, 63
      %s296 = scalar_select %p295, %s294, 63
      %s297 = smul.addr %s296, 8
      %s298 = scalar_lea.vmem %s0, %s297
      %p299 = pneg %p41
      %p300 = pneg %p38
      %p301 = pneg %p62
      %p302 = pneg %p59
      %p303 = pneg %p83
      %p304 = pneg %p80
      %p305 = pneg %p104
      %p306 = pneg %p101
      %p307 = pneg %p125
      %p308 = pneg %p122
      %p309 = pneg %p146
      %p310 = pneg %p143
      %p311 = pneg %p167
      %p312 = pneg %p164
      %p313 = pneg %p188
      %p314 = pneg %p185
      %p315 = pneg %p209
      %p316 = pneg %p206
      %p317 = pneg %p235
      %p318 = pneg %p232
      %s319 = smul.u32 8, %s20
      %p320 = scmp.lt.s32.totalorder %s319, 63
      %s321 = scalar_select %p320, %s319, 63
      %s322 = smul.addr %s321, 8
      %s323 = scalar_lea.vmem %s9, %s322
      %s324 = smul.u32 8, %s20
      %p325 = scmp.lt.s32.totalorder %s324, 63
      %s326 = scalar_select %p325, %s324, 63
      %s327 = smul.addr %s326, 8
      %s328 = scalar_lea.vmem %s0, %s327
      %s329 = smul.u32 8, %s20
      %s330 = smul.u32 8, %s20
      %p331 = scmp.lt.s32.totalorder %s330, 63
      %s332 = scalar_select %p331, %s330, 63
      %s333 = smul.addr %s332, 8
      %s334 = scalar_lea.vmem %s9, %s333
      %s335 = smul.u32 8, %s20
      %v336 = vld [vmem:[%s328] sm:$0xff]
      %v337 = vld [vmem:[%s328 + $0x8] sm:$0xff]
      %v338 = vld [vmem:[%s328 + $0x10] sm:$0xff]
      %v339 = vld [vmem:[%s328 + $0x18] sm:$0xff]
      %v340 = vld [vmem:[%s328 + $0x20] sm:$0xff]
      %v341 = vld [vmem:[%s328 + $0x28] sm:$0xff]
      %v342 = vld [vmem:[%s328 + $0x30] sm:$0xff]
      %v343 = vld [vmem:[%s328 + $0x38] sm:$0xff]
      %vm344 = vcmask 261120
      %v345 = vsel %vm344, %v336, 0.0
      %346 = vadd.xlane.f32.xlu0 %v345
      %v347 = vpop.xlane.xlu0 %346
      %v348 = vsel %vm344, %v337, 0.0
      %349 = vadd.xlane.f32.xlu0 %v348
      %v350 = vpop.xlane.xlu0 %349
      %v351 = vsel %vm344, %v338, 0.0
      %352 = vadd.xlane.f32.xlu0 %v351
      %v353 = vpop.xlane.xlu0 %352
      %v354 = vsel %vm344, %v339, 0.0
      %355 = vadd.xlane.f32.xlu0 %v354
      %v356 = vpop.xlane.xlu0 %355
      %v357 = vsel %vm344, %v340, 0.0
      %358 = vadd.xlane.f32.xlu0 %v357
      %v359 = vpop.xlane.xlu0 %358
      %v360 = vsel %vm344, %v341, 0.0
      %361 = vadd.xlane.f32.xlu0 %v360
      %v362 = vpop.xlane.xlu0 %361
      %v363 = vsel %vm344, %v342, 0.0
      %364 = vadd.xlane.f32.xlu0 %v363
      %v365 = vpop.xlane.xlu0 %364
      %v366 = vsel %vm344, %v343, 0.0
      %367 = vadd.xlane.f32.xlu0 %v366
      %v368 = vpop.xlane.xlu0 %367
      %v369 = vrcp.pop 32.0
      %v370 = vmul.f32 %v347, %v369
      %v371 = vmul.f32 %v350, %v369
      %v372 = vmul.f32 %v353, %v369
      %v373 = vmul.f32 %v356, %v369
      %v374 = vmul.f32 %v359, %v369
      %v375 = vmul.f32 %v362, %v369
      %v376 = vmul.f32 %v365, %v369
      %v377 = vmul.f32 %v368, %v369
      %v378 = vsub.f32 %v336, %v370
      %v379 = vsub.f32 %v337, %v371
      %v380 = vsub.f32 %v338, %v372
      %v381 = vsub.f32 %v339, %v373
      %v382 = vsub.f32 %v340, %v374
      %v383 = vsub.f32 %v341, %v375
      %v384 = vsub.f32 %v342, %v376
      %v385 = vsub.f32 %v343, %v377
      %v386 = vmul.f32 %v378, %v378
      %v387 = vmul.f32 %v379, %v379
      %v388 = vmul.f32 %v380, %v380
      %v389 = vmul.f32 %v381, %v381
      %v390 = vmul.f32 %v382, %v382
      %v391 = vmul.f32 %v383, %v383
      %v392 = vmul.f32 %v384, %v384
      %v393 = vmul.f32 %v385, %v385
      %v394 = vsel %vm344, %v386, 0.0
      %395 = vadd.xlane.f32.xlu0 %v394
      %v396 = vpop.xlane.xlu0 %395
      %v397 = vsel %vm344, %v387, 0.0
      %398 = vadd.xlane.f32.xlu0 %v397
      %v399 = vpop.xlane.xlu0 %398
      %v400 = vsel %vm344, %v388, 0.0
      %401 = vadd.xlane.f32.xlu0 %v400
      %v402 = vpop.xlane.xlu0 %401
      %v403 = vsel %vm344, %v389, 0.0
      %404 = vadd.xlane.f32.xlu0 %v403
      %v405 = vpop.xlane.xlu0 %404
      %v406 = vsel %vm344, %v390, 0.0
      %407 = vadd.xlane.f32.xlu0 %v406
      %v408 = vpop.xlane.xlu0 %407
      %v409 = vsel %vm344, %v391, 0.0
      %410 = vadd.xlane.f32.xlu0 %v409
      %v411 = vpop.xlane.xlu0 %410
      %v412 = vsel %vm344, %v392, 0.0
      %413 = vadd.xlane.f32.xlu0 %v412
      %v414 = vpop.xlane.xlu0 %413
      %v415 = vsel %vm344, %v393, 0.0
      %416 = vadd.xlane.f32.xlu0 %v415
      %v417 = vpop.xlane.xlu0 %416
      %v418 = vmul.f32 %v396, %v369
      %v419 = vmul.f32 %v399, %v369
      %v420 = vmul.f32 %v402, %v369
      %v421 = vmul.f32 %v405, %v369
      %v422 = vmul.f32 %v408, %v369
      %v423 = vmul.f32 %v411, %v369
      %v424 = vmul.f32 %v414, %v369
      %v425 = vmul.f32 %v417, %v369
      %v426 = vadd.f32 %v418, 1e-05
      %v427 = vadd.f32 %v419, 1e-05
      %v428 = vadd.f32 %v420, 1e-05
      %v429 = vadd.f32 %v421, 1e-05
      %v430 = vadd.f32 %v422, 1e-05
      %v431 = vadd.f32 %v423, 1e-05
      %v432 = vadd.f32 %v424, 1e-05
      %v433 = vadd.f32 %v425, 1e-05
      %v434 = vrsqrt.pop %v426
      %v435 = vrsqrt.pop %v427
      %v436 = vrsqrt.pop %v428
      %v437 = vrsqrt.pop %v429
      %v438 = vrsqrt.pop %v430
      %v439 = vrsqrt.pop %v431
      %v440 = vrsqrt.pop %v432
      %v441 = vrsqrt.pop %v433
      %v442 = vmul.f32 %v378, %v434
      %v443 = vmul.f32 %v379, %v435
      %v444 = vmul.f32 %v380, %v436
      %v445 = vmul.f32 %v381, %v437
      %v446 = vmul.f32 %v382, %v438
      %v447 = vmul.f32 %v383, %v439
      %v448 = vmul.f32 %v384, %v440
      %v449 = vmul.f32 %v385, %v441
      %v450 = vld [vmem:[%s1] sm:$0x1]
      %v452 = vlaneseq
      %v453 = vshrl.u32 %v452, 7
      %v454 = vsub.s32 0, %v453
      %v455 = vrot.slane %v450, %v454
      %v457 = vmul.f32 %v442, %v455
      %v458 = vmul.f32 %v443, %v455
      %v459 = vmul.f32 %v444, %v455
      %v460 = vmul.f32 %v445, %v455
      %v461 = vmul.f32 %v446, %v455
      %v462 = vmul.f32 %v447, %v455
      %v463 = vmul.f32 %v448, %v455
      %v464 = vmul.f32 %v449, %v455
      %v465 = vld [vmem:[%s2] sm:$0x1]
      %v467 = vlaneseq
      %v468 = vshrl.u32 %v467, 7
      %v469 = vsub.s32 0, %v468
      %v470 = vrot.slane %v465, %v469
      %v472 = vadd.f32 %v457, %v470
      %v473 = vadd.f32 %v458, %v470
      %v474 = vadd.f32 %v459, %v470
      %v475 = vadd.f32 %v460, %v470
      %v476 = vadd.f32 %v461, %v470
      %v477 = vadd.f32 %v462, %v470
      %v478 = vadd.f32 %v463, %v470
      %v479 = vadd.f32 %v464, %v470
      %v480 = vld [vmem:[%s3] sm:$0xff]
      %v481 = vld [vmem:[%s3 + $0x8] sm:$0xff]
      %v482 = vld [vmem:[%s3 + $0x10] sm:$0xff]
      %v483 = vld [vmem:[%s3 + $0x18] sm:$0xff]
      %v484 = vld [vmem:[%s4] sm:$0x1]
      %v486 = vlaneseq
      %v487 = vshrl.u32 %v486, 7
      %v488 = vsub.s32 0, %v487
      %v489 = vrot.slane %v484, %v488
      %v492 = vsel %vm344, %v472, 0
      %v495 = vsel %vm344, %v473, 0
      %v498 = vsel %vm344, %v474, 0
      %v501 = vsel %vm344, %v475, 0
      %v504 = vsel %vm344, %v476, 0
      %v507 = vsel %vm344, %v477, 0
      %v510 = vsel %vm344, %v478, 0
      %v513 = vsel %vm344, %v479, 0
      %515 = vmatprep.subr.mxu0 0.0
      %516 = vmatpush1.msra.mxu0 %v480
      %517 = vmatprep.subr.mxu0 0.0
      %518 = vmatpush1.msra.mxu0 %v481
      %519 = vmatprep.subr.mxu0 0.0
      %520 = vmatpush1.msra.mxu0 %v482
      %521 = vmatprep.subr.mxu0 0.0
      %522 = vmatpush1.msra.mxu0 %v483
      %523 = vmatprep.subr.mxu0 0.0
      %524 = vmatpush1.msra.mxu0 0.0
      %525 = vmatprep.subr.mxu0 0.0
      %526 = vmatpush1.msra.mxu0 0.0
      %527 = vmatprep.subr.mxu0 0.0
      %528 = vmatpush1.msra.mxu0 0.0
      %529 = vmatprep.subr.mxu0 0.0
      %530 = vmatpush1.msra.mxu0 0.0
      %531 = vmatprep.subr.mxu0 0.0
      %532 = vmatpush1.msra.mxu0 0.0
      %533 = vmatprep.subr.mxu0 0.0
      %534 = vmatpush1.msra.mxu0 0.0
      %535 = vmatprep.subr.mxu0 0.0
      %536 = vmatpush1.msra.mxu0 0.0
      %537 = vmatprep.subr.mxu0 0.0
      %538 = vmatpush1.msra.mxu0 0.0
      %539 = vmatprep.subr.mxu0 0.0
      %540 = vmatpush1.msra.mxu0 0.0
      %541 = vmatprep.subr.mxu0 0.0
      %542 = vmatpush1.msra.mxu0 0.0
      %543 = vmatprep.subr.mxu0 0.0
      %544 = vmatpush1.msra.mxu0 0.0
      %545 = vmatprep.subr.mxu0 0.0
      %546 = vmatpush1.msra.mxu0 0.0
      %547 = vmatprep.subr.mxu0 0.0
      %548 = vmatpush1.msra.mxu0 0.0
      %549 = vmatprep.subr.mxu0 0.0
      %550 = vmatpush1.msra.mxu0 0.0
      %551 = vmatprep.subr.mxu0 0.0
      %552 = vmatpush1.msra.mxu0 0.0
      %553 = vmatprep.subr.mxu0 0.0
      %554 = vmatpush1.msra.mxu0 0.0
      %555 = vmatprep.subr.mxu0 0.0
      %556 = vmatpush1.msra.mxu0 0.0
      %557 = vmatprep.subr.mxu0 0.0
      %558 = vmatpush1.msra.mxu0 0.0
      %559 = vmatprep.subr.mxu0 0.0
      %560 = vmatpush1.msra.mxu0 0.0
      %561 = vmatprep.subr.mxu0 0.0
      %562 = vmatpush1.msra.mxu0 0.0
      %563 = vmatprep.subr.mxu0 0.0
      %564 = vmatpush1.msra.mxu0 0.0
      %565 = vmatprep.subr.mxu0 0.0
      %566 = vmatpush1.msra.mxu0 0.0
      %567 = vmatprep.subr.mxu0 0.0
      %568 = vmatpush1.msra.mxu0 0.0
      %569 = vmatprep.subr.mxu0 0.0
      %570 = vmatpush1.msra.mxu0 0.0
      %571 = vmatprep.subr.mxu0 0.0
      %572 = vmatpush1.msra.mxu0 0.0
      %573 = vmatprep.subr.mxu0 0.0
      %574 = vmatpush1.msra.mxu0 0.0
      %575 = vmatprep.subr.mxu0 0.0
      %576 = vmatpush1.msra.mxu0 0.0
      %577 = vmatprep.subr.mxu0 0.0
      %578 = vmatpush1.msra.mxu0 0.0
      %579 = vmatprep.mubr.f32.mxu0 0.0
      %580 = vmatmul.mubr.f32.gmra.mrb[0].mxu0 %v492
      %v581 = vpop.f32.mrb[0].mxu0
      %v582 = vadd.f32 %v489, %v581
      %v583 = vpop.f32.mrb[0].mxu0
      %584 = vmatprep.mubr.f32.mxu0 0.0
      %585 = vmatmul.mubr.f32.gmra.mrb[0].mxu0 %v495
      %v586 = vpop.f32.mrb[0].mxu0
      %v587 = vadd.f32 %v489, %v586
      %v588 = vpop.f32.mrb[0].mxu0
      %589 = vmatprep.mubr.f32.mxu0 0.0
      %590 = vmatmul.mubr.f32.gmra.mrb[0].mxu0 %v498
      %v591 = vpop.f32.mrb[0].mxu0
      %v592 = vadd.f32 %v489, %v591
      %v593 = vpop.f32.mrb[0].mxu0
      %594 = vmatprep.mubr.f32.mxu0 0.0
      %595 = vmatmul.mubr.f32.gmra.mrb[0].mxu0 %v501
      %v596 = vpop.f32.mrb[0].mxu0
      %v597 = vadd.f32 %v489, %v596
      %v598 = vpop.f32.mrb[0].mxu0
      %599 = vmatprep.mubr.f32.mxu0 0.0
      %600 = vmatmul.mubr.f32.gmra.mrb[0].mxu0 %v504
      %v601 = vpop.f32.mrb[0].mxu0
      %v602 = vadd.f32 %v489, %v601
      %v603 = vpop.f32.mrb[0].mxu0
      %604 = vmatprep.mubr.f32.mxu0 0.0
      %605 = vmatmul.mubr.f32.gmra.mrb[0].mxu0 %v507
      %v606 = vpop.f32.mrb[0].mxu0
      %v607 = vadd.f32 %v489, %v606
      %v608 = vpop.f32.mrb[0].mxu0
      %609 = vmatprep.mubr.f32.mxu0 0.0
      %610 = vmatmul.mubr.f32.gmra.mrb[0].mxu0 %v510
      %v611 = vpop.f32.mrb[0].mxu0
      %v612 = vadd.f32 %v489, %v611
      %v613 = vpop.f32.mrb[0].mxu0
      %614 = vmatprep.mubr.f32.mxu0 0.0
      %615 = vmatmul.mubr.f32.gmra.mrb[0].mxu0 %v513
      %v616 = vpop.f32.mrb[0].mxu0
      %v617 = vadd.f32 %v489, %v616
      %v618 = vpop.f32.mrb[0].mxu0
      %619 = vdwg.mxu0
      %v620 = vmul.f32 %v582, %v582
      %v621 = vmul.f32 %v587, %v587
      %v622 = vmul.f32 %v592, %v592
      %v623 = vmul.f32 %v597, %v597
      %v624 = vmul.f32 %v602, %v602
      %v625 = vmul.f32 %v607, %v607
      %v626 = vmul.f32 %v612, %v612
      %v627 = vmul.f32 %v617, %v617
      %v628 = vmul.f32 %v582, %v620
      %v629 = vmul.f32 %v587, %v621
      %v630 = vmul.f32 %v592, %v622
      %v631 = vmul.f32 %v597, %v623
      %v632 = vmul.f32 %v602, %v624
      %v633 = vmul.f32 %v607, %v625
      %v634 = vmul.f32 %v612, %v626
      %v635 = vmul.f32 %v617, %v627
      %v636 = vmul.f32 %v628, 0.044715
      %v637 = vmul.f32 %v629, 0.044715
      %v638 = vmul.f32 %v630, 0.044715
      %v639 = vmul.f32 %v631, 0.044715
      %v640 = vmul.f32 %v632, 0.044715
      %v641 = vmul.f32 %v633, 0.044715
      %v642 = vmul.f32 %v634, 0.044715
      %v643 = vmul.f32 %v635, 0.044715
      %v644 = vadd.f32 %v582, %v636
      %v645 = vadd.f32 %v587, %v637
      %v646 = vadd.f32 %v592, %v638
      %v647 = vadd.f32 %v597, %v639
      %v648 = vadd.f32 %v602, %v640
      %v649 = vadd.f32 %v607, %v641
      %v650 = vadd.f32 %v612, %v642
      %v651 = vadd.f32 %v617, %v643
      %v652 = vmul.f32 %v644, 0.7978846
      %v653 = vmul.f32 %v645, 0.7978846
      %v654 = vmul.f32 %v646, 0.7978846
      %v655 = vmul.f32 %v647, 0.7978846
      %v656 = vmul.f32 %v648, 0.7978846
      %v657 = vmul.f32 %v649, 0.7978846
      %v658 = vmul.f32 %v650, 0.7978846
      %v659 = vmul.f32 %v651, 0.7978846
      %v660 = vtanh.pop %v652
      %v661 = vtanh.pop %v653
      %v662 = vtanh.pop %v654
      %v663 = vtanh.pop %v655
      %v664 = vtanh.pop %v656
      %v665 = vtanh.pop %v657
      %v666 = vtanh.pop %v658
      %v667 = vtanh.pop %v659
      %v668 = vadd.f32 %v660, 1.0
      %v669 = vadd.f32 %v661, 1.0
      %v670 = vadd.f32 %v662, 1.0
      %v671 = vadd.f32 %v663, 1.0
      %v672 = vadd.f32 %v664, 1.0
      %v673 = vadd.f32 %v665, 1.0
      %v674 = vadd.f32 %v666, 1.0
      %v675 = vadd.f32 %v667, 1.0
      %v676 = vmul.f32 %v668, 0.5
      %v677 = vmul.f32 %v669, 0.5
      %v678 = vmul.f32 %v670, 0.5
      %v679 = vmul.f32 %v671, 0.5
      %v680 = vmul.f32 %v672, 0.5
      %v681 = vmul.f32 %v673, 0.5
      %v682 = vmul.f32 %v674, 0.5
      %v683 = vmul.f32 %v675, 0.5
      %v684 = vmul.f32 %v582, %v676
      %v685 = vmul.f32 %v587, %v677
      %v686 = vmul.f32 %v592, %v678
      %v687 = vmul.f32 %v597, %v679
      %v688 = vmul.f32 %v602, %v680
      %v689 = vmul.f32 %v607, %v681
      %v690 = vmul.f32 %v612, %v682
      %v691 = vmul.f32 %v617, %v683
      %v692 = vld [vmem:[%s5] sm:$0xff]
      %v693 = vld [vmem:[%s5 + $0x8] sm:$0xff]
      %v694 = vld [vmem:[%s5 + $0x10] sm:$0xff]
      %v695 = vld [vmem:[%s5 + $0x18] sm:$0xff]
      %v696 = vld [vmem:[%s5 + $0x20] sm:$0xff]
      %v697 = vld [vmem:[%s5 + $0x28] sm:$0xff]
      %v698 = vld [vmem:[%s5 + $0x30] sm:$0xff]
      %v699 = vld [vmem:[%s5 + $0x38] sm:$0xff]
      %v700 = vld [vmem:[%s5 + $0x40] sm:$0xff]
      %v701 = vld [vmem:[%s5 + $0x48] sm:$0xff]
      %v702 = vld [vmem:[%s5 + $0x50] sm:$0xff]
      %v703 = vld [vmem:[%s5 + $0x58] sm:$0xff]
      %v704 = vld [vmem:[%s5 + $0x60] sm:$0xff]
      %v705 = vld [vmem:[%s5 + $0x68] sm:$0xff]
      %v706 = vld [vmem:[%s5 + $0x70] sm:$0xff]
      %v707 = vld [vmem:[%s5 + $0x78] sm:$0xff]
      %v708 = vld [vmem:[%s6] sm:$0x1]
      %v710 = vlaneseq
      %v711 = vshrl.u32 %v710, 7
      %v712 = vsub.s32 0, %v711
      %v713 = vrot.slane %v708, %v712
      %715 = vmatprep.subr.mxu0 0.0
      %716 = vmatpush1.msra.mxu0 %v692
      %717 = vmatprep.subr.mxu0 0.0
      %718 = vmatpush1.msra.mxu0 %v693
      %719 = vmatprep.subr.mxu0 0.0
      %720 = vmatpush1.msra.mxu0 %v694
      %721 = vmatprep.subr.mxu0 0.0
      %722 = vmatpush1.msra.mxu0 %v695
      %723 = vmatprep.subr.mxu0 0.0
      %724 = vmatpush1.msra.mxu0 %v696
      %725 = vmatprep.subr.mxu0 0.0
      %726 = vmatpush1.msra.mxu0 %v697
      %727 = vmatprep.subr.mxu0 0.0
      %728 = vmatpush1.msra.mxu0 %v698
      %729 = vmatprep.subr.mxu0 0.0
      %730 = vmatpush1.msra.mxu0 %v699
      %731 = vmatprep.subr.mxu0 0.0
      %732 = vmatpush1.msra.mxu0 %v700
      %733 = vmatprep.subr.mxu0 0.0
      %734 = vmatpush1.msra.mxu0 %v701
      %735 = vmatprep.subr.mxu0 0.0
      %736 = vmatpush1.msra.mxu0 %v702
      %737 = vmatprep.subr.mxu0 0.0
      %738 = vmatpush1.msra.mxu0 %v703
      %739 = vmatprep.subr.mxu0 0.0
      %740 = vmatpush1.msra.mxu0 %v704
      %741 = vmatprep.subr.mxu0 0.0
      %742 = vmatpush1.msra.mxu0 %v705
      %743 = vmatprep.subr.mxu0 0.0
      %744 = vmatpush1.msra.mxu0 %v706
      %745 = vmatprep.subr.mxu0 0.0
      %746 = vmatpush1.msra.mxu0 %v707
      %747 = vmatprep.subr.mxu0 0.0
      %748 = vmatpush1.msra.mxu0 0.0
      %749 = vmatprep.subr.mxu0 0.0
      %750 = vmatpush1.msra.mxu0 0.0
      %751 = vmatprep.subr.mxu0 0.0
      %752 = vmatpush1.msra.mxu0 0.0
      %753 = vmatprep.subr.mxu0 0.0
      %754 = vmatpush1.msra.mxu0 0.0
      %755 = vmatprep.subr.mxu0 0.0
      %756 = vmatpush1.msra.mxu0 0.0
      %757 = vmatprep.subr.mxu0 0.0
      %758 = vmatpush1.msra.mxu0 0.0
      %759 = vmatprep.subr.mxu0 0.0
      %760 = vmatpush1.msra.mxu0 0.0
      %761 = vmatprep.subr.mxu0 0.0
      %762 = vmatpush1.msra.mxu0 0.0
      %763 = vmatprep.subr.mxu0 0.0
      %764 = vmatpush1.msra.mxu0 0.0
      %765 = vmatprep.subr.mxu0 0.0
      %766 = vmatpush1.msra.mxu0 0.0
      %767 = vmatprep.subr.mxu0 0.0
      %768 = vmatpush1.msra.mxu0 0.0
      %769 = vmatprep.subr.mxu0 0.0
      %770 = vmatpush1.msra.mxu0 0.0
      %771 = vmatprep.subr.mxu0 0.0
      %772 = vmatpush1.msra.mxu0 0.0
      %773 = vmatprep.subr.mxu0 0.0
      %774 = vmatpush1.msra.mxu0 0.0
      %775 = vmatprep.subr.mxu0 0.0
      %776 = vmatpush1.msra.mxu0 0.0
      %777 = vmatprep.subr.mxu0 0.0
      %778 = vmatpush1.msra.mxu0 0.0
      %779 = vmatprep.mubr.f32.mxu0 0.0
      %780 = vmatmul.mubr.f32.gmra.mrb[0].mxu0 %v684
      %v781 = vpop.f32.mrb[0].mxu0
      %v782 = vadd.f32 %v713, %v781
      %v783 = vpop.f32.mrb[0].mxu0
      %784 = vmatprep.mubr.f32.mxu0 0.0
      %785 = vmatmul.mubr.f32.gmra.mrb[0].mxu0 %v685
      %v786 = vpop.f32.mrb[0].mxu0
      %v787 = vadd.f32 %v713, %v786
      %v788 = vpop.f32.mrb[0].mxu0
      %789 = vmatprep.mubr.f32.mxu0 0.0
      %790 = vmatmul.mubr.f32.gmra.mrb[0].mxu0 %v686
      %v791 = vpop.f32.mrb[0].mxu0
      %v792 = vadd.f32 %v713, %v791
      %v793 = vpop.f32.mrb[0].mxu0
      %794 = vmatprep.mubr.f32.mxu0 0.0
      %795 = vmatmul.mubr.f32.gmra.mrb[0].mxu0 %v687
      %v796 = vpop.f32.mrb[0].mxu0
      %v797 = vadd.f32 %v713, %v796
      %v798 = vpop.f32.mrb[0].mxu0
      %799 = vmatprep.mubr.f32.mxu0 0.0
      %800 = vmatmul.mubr.f32.gmra.mrb[0].mxu0 %v688
      %v801 = vpop.f32.mrb[0].mxu0
      %v802 = vadd.f32 %v713, %v801
      %v803 = vpop.f32.mrb[0].mxu0
      %804 = vmatprep.mubr.f32.mxu0 0.0
      %805 = vmatmul.mubr.f32.gmra.mrb[0].mxu0 %v689
      %v806 = vpop.f32.mrb[0].mxu0
      %v807 = vadd.f32 %v713, %v806
      %v808 = vpop.f32.mrb[0].mxu0
      %809 = vmatprep.mubr.f32.mxu0 0.0
      %810 = vmatmul.mubr.f32.gmra.mrb[0].mxu0 %v690
      %v811 = vpop.f32.mrb[0].mxu0
      %v812 = vadd.f32 %v713, %v811
      %v813 = vpop.f32.mrb[0].mxu0
      %814 = vmatprep.mubr.f32.mxu0 0.0
      %815 = vmatmul.mubr.f32.gmra.mrb[0].mxu0 %v691
      %v816 = vpop.f32.mrb[0].mxu0
      %v817 = vadd.f32 %v713, %v816
      %v818 = vpop.f32.mrb[0].mxu0
      %819 = vdwg.mxu0
      %v820 = vadd.f32 %v472, %v782
      %v821 = vadd.f32 %v473, %v787
      %v822 = vadd.f32 %v474, %v792
      %v823 = vadd.f32 %v475, %v797
      %v824 = vadd.f32 %v476, %v802
      %v825 = vadd.f32 %v477, %v807
      %v826 = vadd.f32 %v478, %v812
      %v827 = vadd.f32 %v479, %v817
      %v828 = vsel %vm344, %v820, 0.0
      %829 = vadd.xlane.f32.xlu0 %v828
      %v830 = vpop.xlane.xlu0 %829
      %v831 = vsel %vm344, %v821, 0.0
      %832 = vadd.xlane.f32.xlu0 %v831
      %v833 = vpop.xlane.xlu0 %832
      %v834 = vsel %vm344, %v822, 0.0
      %835 = vadd.xlane.f32.xlu0 %v834
      %v836 = vpop.xlane.xlu0 %835
      %v837 = vsel %vm344, %v823, 0.0
      %838 = vadd.xlane.f32.xlu0 %v837
      %v839 = vpop.xlane.xlu0 %838
      %v840 = vsel %vm344, %v824, 0.0
      %841 = vadd.xlane.f32.xlu0 %v840
      %v842 = vpop.xlane.xlu0 %841
      %v843 = vsel %vm344, %v825, 0.0
      %844 = vadd.xlane.f32.xlu0 %v843
      %v845 = vpop.xlane.xlu0 %844
      %v846 = vsel %vm344, %v826, 0.0
      %847 = vadd.xlane.f32.xlu0 %v846
      %v848 = vpop.xlane.xlu0 %847
      %v849 = vsel %vm344, %v827, 0.0
      %850 = vadd.xlane.f32.xlu0 %v849
      %v851 = vpop.xlane.xlu0 %850
      %v852 = vmul.f32 %v830, %v369
      %v853 = vmul.f32 %v833, %v369
      %v854 = vmul.f32 %v836, %v369
      %v855 = vmul.f32 %v839, %v369
      %v856 = vmul.f32 %v842, %v369
      %v857 = vmul.f32 %v845, %v369
      %v858 = vmul.f32 %v848, %v369
      %v859 = vmul.f32 %v851, %v369
      %v860 = vsub.f32 %v820, %v852
      %v861 = vsub.f32 %v821, %v853
      %v862 = vsub.f32 %v822, %v854
      %v863 = vsub.f32 %v823, %v855
      %v864 = vsub.f32 %v824, %v856
      %v865 = vsub.f32 %v825, %v857
      %v866 = vsub.f32 %v826, %v858
      %v867 = vsub.f32 %v827, %v859
      %v868 = vmul.f32 %v860, %v860
      %v869 = vmul.f32 %v861, %v861
      %v870 = vmul.f32 %v862, %v862
      %v871 = vmul.f32 %v863, %v863
      %v872 = vmul.f32 %v864, %v864
      %v873 = vmul.f32 %v865, %v865
      %v874 = vmul.f32 %v866, %v866
      %v875 = vmul.f32 %v867, %v867
      %v876 = vsel %vm344, %v868, 0.0
      %877 = vadd.xlane.f32.xlu0 %v876
      %v878 = vpop.xlane.xlu0 %877
      %v879 = vsel %vm344, %v869, 0.0
      %880 = vadd.xlane.f32.xlu0 %v879
      %v881 = vpop.xlane.xlu0 %880
      %v882 = vsel %vm344, %v870, 0.0
      %883 = vadd.xlane.f32.xlu0 %v882
      %v884 = vpop.xlane.xlu0 %883
      %v885 = vsel %vm344, %v871, 0.0
      %886 = vadd.xlane.f32.xlu0 %v885
      %v887 = vpop.xlane.xlu0 %886
      %v888 = vsel %vm344, %v872, 0.0
      %889 = vadd.xlane.f32.xlu0 %v888
      %v890 = vpop.xlane.xlu0 %889
      %v891 = vsel %vm344, %v873, 0.0
      %892 = vadd.xlane.f32.xlu0 %v891
      %v893 = vpop.xlane.xlu0 %892
      %v894 = vsel %vm344, %v874, 0.0
      %895 = vadd.xlane.f32.xlu0 %v894
      %v896 = vpop.xlane.xlu0 %895
      %v897 = vsel %vm344, %v875, 0.0
      %898 = vadd.xlane.f32.xlu0 %v897
      %v899 = vpop.xlane.xlu0 %898
      %v900 = vmul.f32 %v878, %v369
      %v901 = vmul.f32 %v881, %v369
      %v902 = vmul.f32 %v884, %v369
      %v903 = vmul.f32 %v887, %v369
      %v904 = vmul.f32 %v890, %v369
      %v905 = vmul.f32 %v893, %v369
      %v906 = vmul.f32 %v896, %v369
      %v907 = vmul.f32 %v899, %v369
      %v908 = vadd.f32 %v900, 1e-05
      %v909 = vadd.f32 %v901, 1e-05
      %v910 = vadd.f32 %v902, 1e-05
      %v911 = vadd.f32 %v903, 1e-05
      %v912 = vadd.f32 %v904, 1e-05
      %v913 = vadd.f32 %v905, 1e-05
      %v914 = vadd.f32 %v906, 1e-05
      %v915 = vadd.f32 %v907, 1e-05
      %v916 = vrsqrt.pop %v908
      %v917 = vrsqrt.pop %v909
      %v918 = vrsqrt.pop %v910
      %v919 = vrsqrt.pop %v911
      %v920 = vrsqrt.pop %v912
      %v921 = vrsqrt.pop %v913
      %v922 = vrsqrt.pop %v914
      %v923 = vrsqrt.pop %v915
      %v924 = vmul.f32 %v860, %v916
      %v925 = vmul.f32 %v861, %v917
      %v926 = vmul.f32 %v862, %v918
      %v927 = vmul.f32 %v863, %v919
      %v928 = vmul.f32 %v864, %v920
      %v929 = vmul.f32 %v865, %v921
      %v930 = vmul.f32 %v866, %v922
      %v931 = vmul.f32 %v867, %v923
      %v932 = vld [vmem:[%s7] sm:$0x1]
      %v934 = vlaneseq
      %v935 = vshrl.u32 %v934, 7
      %v936 = vsub.s32 0, %v935
      %v937 = vrot.slane %v932, %v936
      %v939 = vmul.f32 %v924, %v937
      %v940 = vmul.f32 %v925, %v937
      %v941 = vmul.f32 %v926, %v937
      %v942 = vmul.f32 %v927, %v937
      %v943 = vmul.f32 %v928, %v937
      %v944 = vmul.f32 %v929, %v937
      %v945 = vmul.f32 %v930, %v937
      %v946 = vmul.f32 %v931, %v937
      %v947 = vld [vmem:[%s8] sm:$0x1]
      %v949 = vlaneseq
      %v950 = vshrl.u32 %v949, 7
      %v951 = vsub.s32 0, %v950
      %v952 = vrot.slane %v947, %v951
      %v954 = vadd.f32 %v939, %v952
      %v955 = vadd.f32 %v940, %v952
      %v956 = vadd.f32 %v941, %v952
      %v957 = vadd.f32 %v942, %v952
      %v958 = vadd.f32 %v943, %v952
      %v959 = vadd.f32 %v944, %v952
      %v960 = vadd.f32 %v945, %v952
      %v961 = vadd.f32 %v946, %v952
      %962 = vst.msk [vmem:[%s334] sm:$0xff] %vm344, %v954
      %963 = vst.msk [vmem:[%s334 + $0x8] sm:$0xff] %vm344, %v955
      %964 = vst.msk [vmem:[%s334 + $0x10] sm:$0xff] %vm344, %v956
      %965 = vst.msk [vmem:[%s334 + $0x18] sm:$0xff] %vm344, %v957
      %966 = vst.msk [vmem:[%s334 + $0x20] sm:$0xff] %vm344, %v958
      %967 = vst.msk [vmem:[%s334 + $0x28] sm:$0xff] %vm344, %v959
      %968 = vst.msk [vmem:[%s334 + $0x30] sm:$0xff] %vm344, %v960
      %969 = vst.msk [vmem:[%s334 + $0x38] sm:$0xff] %vm344, %v961
      %s970 = smul.u32 8, %s20
      %p971 = scmp.lt.s32.totalorder %s970, 63
      %s972 = scalar_select %p971, %s970, 63
      %s973 = smul.addr %s972, 8
      %s974 = scalar_lea.vmem %s9, %s973
      // Predicated region
      $region57: #{fused_ln_mlp_ln.1} parent=55 // pred_check
        %p975 = pneg %p232
      $region58: #{fused_ln_mlp_ln.1} parent=55 // pred_check_branch
        %977 = sbr.rel (%p975) target = $region60
      $region59: #{fused_ln_mlp_ln.1} parent=55 // pred_region
        %s978 = smul.u32 8, %s20
      $region60: #{fused_ln_mlp_ln.1} parent=55 // pred_fallthru
        _
    $region56: #{fused_ln_mlp_ln.1} parent=5 // pred_fallthru
      _
    %p979 = scmp.le.s32.totalorder 2, %s15
    // Predicated region
    $region61: #{fused_ln_mlp_ln.1} parent=5 // pred_check
      %p980 = pneg %p979
    $region62: #{fused_ln_mlp_ln.1} parent=5 // pred_check_branch
      %982 = sbr.rel (%p980) target = $region64
    $region63: #{fused_ln_mlp_ln.1} parent=5 // pred_region
      %s983 = ssub.s32 %s15, 2
      // Predicated region
      $region65: #{fused_ln_mlp_ln.1} parent=63 // pred_check
        %p984 = pneg %p238
      $region66: #{fused_ln_mlp_ln.1} parent=63 // pred_check_branch
        %986 = sbr.rel (%p984) target = $region68
      $region67: #{fused_ln_mlp_ln.1} parent=63 // pred_region
        %s987 = smul.u32 8, %s21
        %p988 = scmp.lt.s32.totalorder %s987, 63
        %s989 = scalar_select %p988, %s987, 63
        %s990 = smul.addr %s989, 8
        %s991 = scalar_lea.vmem %s9, %s990
      $region68: #{fused_ln_mlp_ln.1} parent=63 // pred_fallthru
        _
    $region64: #{fused_ln_mlp_ln.1} parent=5 // pred_fallthru
      _
  $region6: #{fused_ln_mlp_ln.1} parent=0 // loop_footer
    %s19 = sadd.s32 1, %s15
  $region7: #{fused_ln_mlp_ln.1} parent=0 // loop_footer_branch
    %14 = sbr.rel target = $region3
  $region8: #{fused_ln_mlp_ln.1} parent=0 // loop_exit
    _

</llo_original>
